<compile_context>
chip_gen: v6e
topology: v6e:2x2x1
jax: 0.10.0
libtpu: 0.0.40
codegen_flags: <defaults>
</compile_context>

<pallas_src>
import functools

import jax
import jax.numpy as jnp
import numpy as np
from jax.experimental import pallas as pl
from jax.experimental.pallas import tpu as pltpu

# ----- "cfg" constants (deterministic, in-script) ---------------------------
NUM_CLASSES = 8       # C
FEAT_DIM = 32         # A
IGNORE_LABEL = 255    # cfg.INPUT.IGNORE_LABEL
TAU = 0.07            # cfg.SOLVER.TAU
EPS = 1e-12           # F.normalize default eps


def _pcl_kernel(m1_ref, m2_ref, feat_ref, lab_ref,
                ce_ref, pcl_ref, msk_ref, *, ignore_label):
    # feat tile: (A, TN), pixels lane-dense
    ft = feat_ref[...].astype(jnp.float32)                       # (A, TN)
    f2 = ft * ft                                                 # (A, TN)

    # L2 norm per pixel (column): clamp sumsq at EPS^2 == clamping ||x|| at EPS
    sumsq = jnp.sum(f2, axis=0, keepdims=True)                   # (1, TN)
    inv_norm = jax.lax.rsqrt(jnp.maximum(sumsq, EPS * EPS))      # (1, TN)  EUP
    inv_sq = inv_norm * inv_norm

    m1 = m1_ref[...]                                             # (C, A) = normalize(Mean)/tau
    m2 = m2_ref[...]                                             # (C, A) = 0.5*normalize(Cov)/tau^2

    # Matmuls on the raw features; fold the normalization in per column
    # (exact: both terms are linear in feat / feat^2 respectively).
    t1 = jnp.dot(m1, ft, preferred_element_type=jnp.float32) * inv_norm   # (C, TN)
    t2 = jnp.dot(m2, f2, preferred_element_type=jnp.float32) * inv_sq     # (C, TN)
    logits = t1 + t2                                             # already /tau

    labels = lab_ref[...]                                        # (1, TN) int32
    maskf = (labels != ignore_label).astype(jnp.float32)         # (1, TN)

    cls_iota = jax.lax.broadcasted_iota(jnp.int32, logits.shape, 0)  # (C, TN)
    onehot = (cls_iota == labels).astype(jnp.float32)                # (C, TN)

    # cross entropy per pixel: logsumexp(logits) - logits[label]
    mx = jnp.max(logits, axis=0, keepdims=True)                  # (1, TN)
    lse = jnp.log(jnp.sum(jnp.exp(logits - mx), axis=0, keepdims=True)) + mx
    picked = jnp.sum(logits * onehot, axis=0, keepdims=True)     # (1, TN)
    ce_ref[...] = (lse - picked) * maskf

    # pcl per pixel: 0.5 * sum_a feat_n^2 * normalize(Cov)[label] / tau^2 == t2[label]
    pcl_ref[...] = jnp.sum(t2 * onehot, axis=0, keepdims=True) * maskf
    msk_ref[...] = maskf


@functools.partial(jax.jit, static_argnames=("tau", "ignore_label", "tn"))
def pixel_contrastive_loss(Mean, CoVariance, feat, labels,
                           tau=TAU, ignore_label=IGNORE_LABEL, tn=2048):
    N, A = feat.shape
    C = Mean.shape[0]
    n_tiles = pl.cdiv(N, tn)
    n_pad = n_tiles * tn

    # --- one-time, tiny (C, A) preprocessing; 1/tau factors pre-folded ------
    def _l2n(x):
        x = x.astype(jnp.float32)
        nrm = jnp.sqrt(jnp.sum(x * x, axis=-1, keepdims=True))
        return x / jnp.maximum(nrm, EPS)

    m1 = _l2n(Mean) / tau
    m2 = 0.5 * _l2n(CoVariance) / (tau * tau)

    # --- lane-dense (A, N) layout; pad pixels to a tile multiple ------------
    # (If the upstream network already produces (A, B*H*W) / NCHW features,
    #  pass them directly and skip this transpose.)
    featT = jnp.transpose(feat.astype(jnp.float32))              # (A, N)
    featT = jnp.pad(featT, ((0, 0), (0, n_pad - N)))
    labels2d = jnp.pad(labels.astype(jnp.int32), (0, n_pad - N),
                       constant_values=ignore_label).reshape(1, n_pad)

    kernel = functools.partial(_pcl_kernel, ignore_label=ignore_label)

    grid_spec = pltpu.PrefetchScalarGridSpec(
        num_scalar_prefetch=0,
        grid=(n_tiles,),
        in_specs=[
            pl.BlockSpec((C, A), lambda i: (0, 0)),    # M1 (resident)
            pl.BlockSpec((C, A), lambda i: (0, 0)),    # M2 (resident)
            pl.BlockSpec((A, tn), lambda i: (0, i)),   # feat tile (lane-dense)
            pl.BlockSpec((1, tn), lambda i: (0, i)),   # labels tile
        ],
        out_specs=[
            pl.BlockSpec((1, tn), lambda i: (0, i)),   # per-pixel ce (masked)
            pl.BlockSpec((1, tn), lambda i: (0, i)),   # per-pixel pcl (masked)
            pl.BlockSpec((1, tn), lambda i: (0, i)),   # valid mask
        ],
    )

    ce_pp, pcl_pp, msk = pl.pallas_call(
        kernel,
        grid_spec=grid_spec,
        out_shape=(
            jax.ShapeDtypeStruct((1, n_pad), jnp.float32),
            jax.ShapeDtypeStruct((1, n_pad), jnp.float32),
            jax.ShapeDtypeStruct((1, n_pad), jnp.float32),
        ),
        compiler_params=pltpu.CompilerParams(
            dimension_semantics=("parallel",)),
    )(m1, m2, featT, labels2d)

    # Glue: mean over valid pixels (the masked select in PyTorch),
    # guarded against the all-ignored degenerate case.
    cnt = jnp.sum(msk)
    safe_cnt = jnp.maximum(cnt, 1.0)
    loss = (jnp.sum(ce_pp) + jnp.sum(pcl_pp)) / safe_cnt
    return jnp.where(cnt > 0, loss, 0.0)


# ----- pure-numpy reference (mirrors the PyTorch code) ----------------------
def _ref_loss(Mean, Cov, feat, labels, tau, ignore):
    Mean = np.asarray(Mean, np.float64)
    Cov = np.asarray(Cov, np.float64)
    feat = np.asarray(feat, np.float64)
    labels = np.asarray(labels)
    mask = labels != ignore
    labels = labels[mask]
    feat = feat[mask]

    def l2n(x):
        return x / np.maximum(np.linalg.norm(x, axis=1, keepdims=True), EPS)

    feat = l2n(feat)
    Mean = l2n(Mean)
    Cov = l2n(Cov)
    temp1 = feat @ Mean.T
    Cov = Cov / tau
    temp2 = 0.5 * (feat ** 2) @ Cov.T
    logits = (temp1 + temp2) / tau
    m = logits.max(axis=1, keepdims=True)
    lse = np.log(np.exp(logits - m).sum(axis=1)) + m[:, 0]
    ce = (lse - logits[np.arange(len(labels)), labels]).mean()
    pcl = 0.5 * np.sum(feat ** 2 * Cov[labels], axis=1).mean() / tau
    return ce + pcl


if __name__ == "__main__":
    key = jax.random.PRNGKey(0)
    kf, km, kc, kl, ki = jax.random.split(key, 5)

    B, H, W = 2, 16, 16
    N = B * H * W                       # 512 pixels
    A, C = FEAT_DIM, NUM_CLASSES

    feat = jax.random.normal(kf, (N, A), dtype=jnp.float32)
    Mean = jax.random.normal(km, (C, A), dtype=jnp.float32)
    CoVariance = jnp.abs(jax.random.normal(kc, (C, A), dtype=jnp.float32)) + 0.1
    labels = jax.random.randint(kl, (N,), 0, C, dtype=jnp.int32)
    # mark ~10% of pixels as IGNORE_LABEL
    ignore_mask = jax.random.bernoulli(ki, 0.1, (N,))
    labels = jnp.where(ignore_mask, IGNORE_LABEL, labels)

    loss = pixel_contrastive_loss(Mean, CoVariance, feat, labels)
    loss = jax.block_until_ready(loss)

    ref = _ref_loss(Mean, CoVariance, feat, labels, TAU, IGNORE_LABEL)
    np.testing.assert_allclose(float(loss), float(ref), rtol=2e-4, atol=1e-4)

    print("KERNEL_OK")
</pallas_src>

<mosaic_0001>
module attributes {stable_mosaic.version = 11 : i64} {
  func.func @_pcl_kernel(%arg0: i32, %arg1: memref<8x32xf32, #tpu.memory_space<vmem>>, %arg2: memref<8x32xf32, #tpu.memory_space<vmem>>, %arg3: memref<32x2048xf32, #tpu.memory_space<vmem>>, %arg4: memref<1x2048xi32, #tpu.memory_space<vmem>>, %arg5: memref<1x2048xf32, #tpu.memory_space<vmem>>, %arg6: memref<1x2048xf32, #tpu.memory_space<vmem>>, %arg7: memref<1x2048xf32, #tpu.memory_space<vmem>>) attributes {dimension_semantics = [#tpu.dimension_semantics<parallel>], iteration_bounds = array<i64: 1>, scalar_prefetch = 0 : i64, scratch_operands = 0 : i64, tpu.core_type = #tpu.core_type<tc>, window_params = [{pipeline_mode = #tpu.pipeline_mode<synchronous>, transform_indices = @transform_0, window_bounds = array<i64: 8, 32>}, {pipeline_mode = #tpu.pipeline_mode<synchronous>, transform_indices = @transform_1, window_bounds = array<i64: 8, 32>}, {transform_indices = @transform_2, window_bounds = array<i64: 32, 2048>}, {transform_indices = @transform_3, window_bounds = array<i64: 1, 2048>}, {transform_indices = @transform_4, window_bounds = array<i64: 1, 2048>}, {transform_indices = @transform_5, window_bounds = array<i64: 1, 2048>}, {transform_indices = @transform_6, window_bounds = array<i64: 1, 2048>}]} {
    %c0 = arith.constant 0 : index
    %c0_0 = arith.constant 0 : index
    %0 = vector.load %arg3[%c0, %c0_0] : memref<32x2048xf32, #tpu.memory_space<vmem>>, vector<32x2048xf32>
    %1 = arith.mulf %0, %0 : vector<32x2048xf32>
    %cst = arith.constant dense<0.000000e+00> : vector<2048xf32>
    %2 = vector.multi_reduction <add>, %1, %cst [0] : vector<32x2048xf32> to vector<2048xf32>
    %3 = vector.shape_cast %2 : vector<2048xf32> to vector<1x2048xf32>
    %cst_1 = arith.constant 1.000000e-24 : f32
    %4 = vector.broadcast %cst_1 : f32 to vector<1x2048xf32>
    %5 = arith.maximumf %3, %4 : vector<1x2048xf32>
    %6 = math.rsqrt %5 : vector<1x2048xf32>
    %7 = arith.mulf %6, %6 : vector<1x2048xf32>
    %c0_2 = arith.constant 0 : index
    %c0_3 = arith.constant 0 : index
    %8 = vector.load %arg1[%c0_2, %c0_3] : memref<8x32xf32, #tpu.memory_space<vmem>>, vector<8x32xf32>
    %c0_4 = arith.constant 0 : index
    %c0_5 = arith.constant 0 : index
    %9 = vector.load %arg2[%c0_4, %c0_5] : memref<8x32xf32, #tpu.memory_space<vmem>>, vector<8x32xf32>
    %cst_6 = arith.constant dense<0.000000e+00> : vector<8x2048xf32>
    %10 = tpu.matmul %8, %0, %cst_6 {dimension_numbers = #tpu.dot_dimension_numbers<[1], [0], [0], [1], [0, 0, 1, 1], [], []>} : vector<8x32xf32>, vector<32x2048xf32>, vector<8x2048xf32> -> vector<8x2048xf32>
    %11 = vector.broadcast %6 : vector<1x2048xf32> to vector<8x2048xf32>
    %12 = arith.mulf %10, %11 : vector<8x2048xf32>
    %cst_7 = arith.constant dense<0.000000e+00> : vector<8x2048xf32>
    %13 = tpu.matmul %9, %1, %cst_7 {dimension_numbers = #tpu.dot_dimension_numbers<[1], [0], [0], [1], [0, 0, 1, 1], [], []>} : vector<8x32xf32>, vector<32x2048xf32>, vector<8x2048xf32> -> vector<8x2048xf32>
    %14 = vector.broadcast %7 : vector<1x2048xf32> to vector<8x2048xf32>
    %15 = arith.mulf %13, %14 : vector<8x2048xf32>
    %16 = arith.addf %12, %15 : vector<8x2048xf32>
    %c0_8 = arith.constant 0 : index
    %c0_9 = arith.constant 0 : index
    %17 = vector.load %arg4[%c0_8, %c0_9] : memref<1x2048xi32, #tpu.memory_space<vmem>>, vector<1x2048xi32>
    %c255_i32 = arith.constant 255 : i32
    %18 = vector.broadcast %c255_i32 : i32 to vector<1x2048xi32>
    %19 = arith.cmpi ne, %17, %18 : vector<1x2048xi32>
    %20 = arith.extui %19 : vector<1x2048xi1> to vector<1x2048xi32>
    %21 = arith.sitofp %20 : vector<1x2048xi32> to vector<1x2048xf32>
    %22 = tpu.iota {dimensions = array<i32: 0>} : vector<8x2048xi32>
    %23 = vector.broadcast %17 : vector<1x2048xi32> to vector<8x2048xi32>
    %24 = arith.cmpi eq, %22, %23 : vector<8x2048xi32>
    %25 = arith.extui %24 : vector<8x2048xi1> to vector<8x2048xi32>
    %26 = arith.sitofp %25 : vector<8x2048xi32> to vector<8x2048xf32>
    %cst_10 = arith.constant dense<0xFF800000> : vector<2048xf32>
    %27 = vector.multi_reduction <maximumf>, %16, %cst_10 [0] : vector<8x2048xf32> to vector<2048xf32>
    %28 = vector.shape_cast %27 : vector<2048xf32> to vector<1x2048xf32>
    %29 = vector.broadcast %28 : vector<1x2048xf32> to vector<8x2048xf32>
    %30 = arith.subf %16, %29 : vector<8x2048xf32>
    %31 = math.exp %30 : vector<8x2048xf32>
    %cst_11 = arith.constant dense<0.000000e+00> : vector<2048xf32>
    %32 = vector.multi_reduction <add>, %31, %cst_11 [0] : vector<8x2048xf32> to vector<2048xf32>
    %33 = vector.shape_cast %32 : vector<2048xf32> to vector<1x2048xf32>
    %34 = math.log %33 : vector<1x2048xf32>
    %35 = arith.addf %34, %28 : vector<1x2048xf32>
    %36 = arith.mulf %16, %26 : vector<8x2048xf32>
    %cst_12 = arith.constant dense<0.000000e+00> : vector<2048xf32>
    %37 = vector.multi_reduction <add>, %36, %cst_12 [0] : vector<8x2048xf32> to vector<2048xf32>
    %38 = vector.shape_cast %37 : vector<2048xf32> to vector<1x2048xf32>
    %39 = arith.subf %35, %38 : vector<1x2048xf32>
    %40 = arith.mulf %39, %21 : vector<1x2048xf32>
    %c0_13 = arith.constant 0 : index
    %c0_14 = arith.constant 0 : index
    %41 = vector.load %arg5[%c0_13, %c0_14] : memref<1x2048xf32, #tpu.memory_space<vmem>>, vector<1x2048xf32>
    tpu.vector_store %arg5[%c0_13, %c0_14], %40 {strides = array<i32>} : memref<1x2048xf32, #tpu.memory_space<vmem>>, vector<1x2048xf32>,
    %42 = arith.mulf %15, %26 : vector<8x2048xf32>
    %cst_15 = arith.constant dense<0.000000e+00> : vector<2048xf32>
    %43 = vector.multi_reduction <add>, %42, %cst_15 [0] : vector<8x2048xf32> to vector<2048xf32>
    %44 = vector.shape_cast %43 : vector<2048xf32> to vector<1x2048xf32>
    %45 = arith.mulf %44, %21 : vector<1x2048xf32>
    %c0_16 = arith.constant 0 : index
    %c0_17 = arith.constant 0 : index
    %46 = vector.load %arg6[%c0_16, %c0_17] : memref<1x2048xf32, #tpu.memory_space<vmem>>, vector<1x2048xf32>
    tpu.vector_store %arg6[%c0_16, %c0_17], %45 {strides = array<i32>} : memref<1x2048xf32, #tpu.memory_space<vmem>>, vector<1x2048xf32>,
    %c0_18 = arith.constant 0 : index
    %c0_19 = arith.constant 0 : index
    %47 = vector.load %arg7[%c0_18, %c0_19] : memref<1x2048xf32, #tpu.memory_space<vmem>>, vector<1x2048xf32>
    tpu.vector_store %arg7[%c0_18, %c0_19], %21 {strides = array<i32>} : memref<1x2048xf32, #tpu.memory_space<vmem>>, vector<1x2048xf32>,
    return
  }
  func.func @transform_0(%arg0: i32) -> (i32, i32) {
    %c0_i32 = arith.constant 0 : i32
    %c0_i32_0 = arith.constant 0 : i32
    %c0_i32_1 = arith.constant 0 : i32
    return %c0_i32, %c0_i32_0 : i32, i32
  }
  func.func @transform_1(%arg0: i32) -> (i32, i32) {
    %c0_i32 = arith.constant 0 : i32
    %c0_i32_0 = arith.constant 0 : i32
    %c0_i32_1 = arith.constant 0 : i32
    return %c0_i32, %c0_i32_0 : i32, i32
  }
  func.func @transform_2(%arg0: i32) -> (i32, i32) {
    %c0_i32 = arith.constant 0 : i32
    %c0_i32_0 = arith.constant 0 : i32
    return %c0_i32, %arg0 : i32, i32
  }
  func.func @transform_3(%arg0: i32) -> (i32, i32) {
    %c0_i32 = arith.constant 0 : i32
    %c0_i32_0 = arith.constant 0 : i32
    return %c0_i32, %arg0 : i32, i32
  }
  func.func @transform_4(%arg0: i32) -> (i32, i32) {
    %c0_i32 = arith.constant 0 : i32
    %c0_i32_0 = arith.constant 0 : i32
    return %c0_i32, %arg0 : i32, i32
  }
  func.func @transform_5(%arg0: i32) -> (i32, i32) {
    %c0_i32 = arith.constant 0 : i32
    %c0_i32_0 = arith.constant 0 : i32
    return %c0_i32, %arg0 : i32, i32
  }
  func.func @transform_6(%arg0: i32) -> (i32, i32) {
    %c0_i32 = arith.constant 0 : i32
    %c0_i32_0 = arith.constant 0 : i32
    return %c0_i32, %arg0 : i32, i32
  }
}

</mosaic_0001>

<llo_original>
// kernel: pixel_contrastive_loss.1
$region0: #{pixel_contrastive_loss.1}
  #allocation0 [shape = 'u32[]', space=smem, size = 0x4, offset = 0x4, fixed_abs, tag = 'smem constant byte address 0x4 - core index']
  #allocation1 [shape = 'u32[144,128]{1,0:T(1,128)}', space=vmem, size = 0x12000, scoped, tag = 'internal scratch']
  %s0 = inlined_call_operand.vmem [shape: f32[8,32], index: 0, kind: input, shape index: {}]
  %s1 = inlined_call_operand.vmem [shape: f32[8,32], index: 1, kind: input, shape index: {}]
  %s2 = inlined_call_operand.vmem [shape: f32[32,2048], index: 2, kind: input, shape index: {}]
  %s3 = inlined_call_operand.vmem [shape: s32[1,2048], index: 3, kind: input, shape index: {}]
  %s4 = inlined_call_operand.vmem [shape: f32[1,2048], index: 4, kind: output, shape index: {0}]
  %s5 = inlined_call_operand.vmem [shape: f32[1,2048], index: 5, kind: output, shape index: {1}]
  %s6 = inlined_call_operand.vmem [shape: f32[1,2048], index: 6, kind: output, shape index: {2}]
  %7 = xla_tuple %s4, %s5, %s6
  %s8 = sld [smem:[#allocation0]]
  $region42: #{pixel_contrastive_loss.1} parent=0
    _
  %s10 = ssub.s32 1, %s8
  %s11 = scalar_select 0, %s10, %s8
  // Predicated region
  $region2: #{pixel_contrastive_loss.1} parent=0 // pred_check
    _
  $region3: #{pixel_contrastive_loss.1} parent=0 // pred_check_branch
    %13 = sbr.rel (0) target = $region5
  $region4: #{pixel_contrastive_loss.1} parent=0 // pred_region
    _
  $region5: #{pixel_contrastive_loss.1} parent=0 // pred_fallthru
    _
  // Predicated region
  $region6: #{pixel_contrastive_loss.1} parent=0 // pred_check
    _
  $region7: #{pixel_contrastive_loss.1} parent=0 // pred_check_branch
    %15 = sbr.rel (0) target = $region9
  $region8: #{pixel_contrastive_loss.1} parent=0 // pred_region
    _
  $region9: #{pixel_contrastive_loss.1} parent=0 // pred_fallthru
    _
  // Predicated region
  $region10: #{pixel_contrastive_loss.1} parent=0 // pred_check
    _
  $region11: #{pixel_contrastive_loss.1} parent=0 // pred_check_branch
    %17 = sbr.rel (0) target = $region13
  $region12: #{pixel_contrastive_loss.1} parent=0 // pred_region
    _
  $region13: #{pixel_contrastive_loss.1} parent=0 // pred_fallthru
    _
  // Predicated region
  $region14: #{pixel_contrastive_loss.1} parent=0 // pred_check
    _
  $region15: #{pixel_contrastive_loss.1} parent=0 // pred_check_branch
    %19 = sbr.rel (0) target = $region17
  $region16: #{pixel_contrastive_loss.1} parent=0 // pred_region
    _
  $region17: #{pixel_contrastive_loss.1} parent=0 // pred_fallthru
    _
  %v20 = vld [vmem:[%s2] sm:$0xff]
  %v21 = vld [vmem:[%s2 + $0x8] sm:$0xff]
  %v22 = vld [vmem:[%s2 + $0x10] sm:$0xff]
  %v23 = vld [vmem:[%s2 + $0x18] sm:$0xff]
  %v24 = vld [vmem:[%s2 + $0x20] sm:$0xff]
  %v25 = vld [vmem:[%s2 + $0x28] sm:$0xff]
  %v26 = vld [vmem:[%s2 + $0x30] sm:$0xff]
  %v27 = vld [vmem:[%s2 + $0x38] sm:$0xff]
  %v28 = vld [vmem:[%s2 + $0x40] sm:$0xff]
  %v29 = vld [vmem:[%s2 + $0x48] sm:$0xff]
  %v30 = vld [vmem:[%s2 + $0x50] sm:$0xff]
  %v31 = vld [vmem:[%s2 + $0x58] sm:$0xff]
  %v32 = vld [vmem:[%s2 + $0x60] sm:$0xff]
  %v33 = vld [vmem:[%s2 + $0x68] sm:$0xff]
  %v34 = vld [vmem:[%s2 + $0x70] sm:$0xff]
  %v35 = vld [vmem:[%s2 + $0x78] sm:$0xff]
  %v36 = vld [vmem:[%s2 + $0x80] sm:$0xff]
  %v37 = vld [vmem:[%s2 + $0x88] sm:$0xff]
  %v38 = vld [vmem:[%s2 + $0x90] sm:$0xff]
  %v39 = vld [vmem:[%s2 + $0x98] sm:$0xff]
  %v40 = vld [vmem:[%s2 + $0xa0] sm:$0xff]
  %v41 = vld [vmem:[%s2 + $0xa8] sm:$0xff]
  %v42 = vld [vmem:[%s2 + $0xb0] sm:$0xff]
  %v43 = vld [vmem:[%s2 + $0xb8] sm:$0xff]
  %v44 = vld [vmem:[%s2 + $0xc0] sm:$0xff]
  %v45 = vld [vmem:[%s2 + $0xc8] sm:$0xff]
  %v46 = vld [vmem:[%s2 + $0xd0] sm:$0xff]
  %v47 = vld [vmem:[%s2 + $0xd8] sm:$0xff]
  %v48 = vld [vmem:[%s2 + $0xe0] sm:$0xff]
  %v49 = vld [vmem:[%s2 + $0xe8] sm:$0xff]
  %v50 = vld [vmem:[%s2 + $0xf0] sm:$0xff]
  %v51 = vld [vmem:[%s2 + $0xf8] sm:$0xff]
  %v52 = vld [vmem:[%s2 + $0x100] sm:$0xff]
  %v53 = vld [vmem:[%s2 + $0x108] sm:$0xff]
  %v54 = vld [vmem:[%s2 + $0x110] sm:$0xff]
  %v55 = vld [vmem:[%s2 + $0x118] sm:$0xff]
  %v56 = vld [vmem:[%s2 + $0x120] sm:$0xff]
  %v57 = vld [vmem:[%s2 + $0x128] sm:$0xff]
  %v58 = vld [vmem:[%s2 + $0x130] sm:$0xff]
  %v59 = vld [vmem:[%s2 + $0x138] sm:$0xff]
  %v60 = vld [vmem:[%s2 + $0x140] sm:$0xff]
  %v61 = vld [vmem:[%s2 + $0x148] sm:$0xff]
  %v62 = vld [vmem:[%s2 + $0x150] sm:$0xff]
  %v63 = vld [vmem:[%s2 + $0x158] sm:$0xff]
  %v64 = vld [vmem:[%s2 + $0x160] sm:$0xff]
  %v65 = vld [vmem:[%s2 + $0x168] sm:$0xff]
  %v66 = vld [vmem:[%s2 + $0x170] sm:$0xff]
  %v67 = vld [vmem:[%s2 + $0x178] sm:$0xff]
  %v68 = vld [vmem:[%s2 + $0x180] sm:$0xff]
  %v69 = vld [vmem:[%s2 + $0x188] sm:$0xff]
  %v70 = vld [vmem:[%s2 + $0x190] sm:$0xff]
  %v71 = vld [vmem:[%s2 + $0x198] sm:$0xff]
  %v72 = vld [vmem:[%s2 + $0x1a0] sm:$0xff]
  %v73 = vld [vmem:[%s2 + $0x1a8] sm:$0xff]
  %v74 = vld [vmem:[%s2 + $0x1b0] sm:$0xff]
  %v75 = vld [vmem:[%s2 + $0x1b8] sm:$0xff]
  %v76 = vld [vmem:[%s2 + $0x1c0] sm:$0xff]
  %v77 = vld [vmem:[%s2 + $0x1c8] sm:$0xff]
  %v78 = vld [vmem:[%s2 + $0x1d0] sm:$0xff]
  %v79 = vld [vmem:[%s2 + $0x1d8] sm:$0xff]
  %v80 = vld [vmem:[%s2 + $0x1e0] sm:$0xff]
  %v81 = vld [vmem:[%s2 + $0x1e8] sm:$0xff]
  %v82 = vld [vmem:[%s2 + $0x1f0] sm:$0xff]
  %v83 = vld [vmem:[%s2 + $0x1f8] sm:$0xff]
  %v84 = vmul.f32 %v20, %v20
  %v85 = vmul.f32 %v21, %v21
  %v86 = vmul.f32 %v22, %v22
  %v87 = vmul.f32 %v23, %v23
  %v88 = vmul.f32 %v24, %v24
  %v89 = vmul.f32 %v25, %v25
  %v90 = vmul.f32 %v26, %v26
  %v91 = vmul.f32 %v27, %v27
  %v92 = vmul.f32 %v28, %v28
  %v93 = vmul.f32 %v29, %v29
  %v94 = vmul.f32 %v30, %v30
  %v95 = vmul.f32 %v31, %v31
  %v96 = vmul.f32 %v32, %v32
  %v97 = vmul.f32 %v33, %v33
  %v98 = vmul.f32 %v34, %v34
  %v99 = vmul.f32 %v35, %v35
  %v100 = vmul.f32 %v36, %v36
  %v101 = vmul.f32 %v37, %v37
  %v102 = vmul.f32 %v38, %v38
  %v103 = vmul.f32 %v39, %v39
  %v104 = vmul.f32 %v40, %v40
  %v105 = vmul.f32 %v41, %v41
  %v106 = vmul.f32 %v42, %v42
  %v107 = vmul.f32 %v43, %v43
  %v108 = vmul.f32 %v44, %v44
  %v109 = vmul.f32 %v45, %v45
  %v110 = vmul.f32 %v46, %v46
  %v111 = vmul.f32 %v47, %v47
  %v112 = vmul.f32 %v48, %v48
  %v113 = vmul.f32 %v49, %v49
  %v114 = vmul.f32 %v50, %v50
  %v115 = vmul.f32 %v51, %v51
  %v116 = vmul.f32 %v52, %v52
  %v117 = vmul.f32 %v53, %v53
  %v118 = vmul.f32 %v54, %v54
  %v119 = vmul.f32 %v55, %v55
  %v120 = vmul.f32 %v56, %v56
  %v121 = vmul.f32 %v57, %v57
  %v122 = vmul.f32 %v58, %v58
  %v123 = vmul.f32 %v59, %v59
  %v124 = vmul.f32 %v60, %v60
  %v125 = vmul.f32 %v61, %v61
  %v126 = vmul.f32 %v62, %v62
  %v127 = vmul.f32 %v63, %v63
  %v128 = vmul.f32 %v64, %v64
  %v129 = vmul.f32 %v65, %v65
  %v130 = vmul.f32 %v66, %v66
  %v131 = vmul.f32 %v67, %v67
  %v132 = vmul.f32 %v68, %v68
  %v133 = vmul.f32 %v69, %v69
  %v134 = vmul.f32 %v70, %v70
  %v135 = vmul.f32 %v71, %v71
  %v136 = vmul.f32 %v72, %v72
  %v137 = vmul.f32 %v73, %v73
  %v138 = vmul.f32 %v74, %v74
  %v139 = vmul.f32 %v75, %v75
  %v140 = vmul.f32 %v76, %v76
  %v141 = vmul.f32 %v77, %v77
  %v142 = vmul.f32 %v78, %v78
  %v143 = vmul.f32 %v79, %v79
  %v144 = vmul.f32 %v80, %v80
  %v145 = vmul.f32 %v81, %v81
  %v146 = vmul.f32 %v82, %v82
  %v147 = vmul.f32 %v83, %v83
  %v148 = vadd.f32 %v84, %v100
  %v149 = vadd.f32 %v148, %v116
  %v150 = vadd.f32 %v149, %v132
  %v151 = vrot.slane %v150, 4
  %v152 = vadd.f32 %v150, %v151
  %v153 = vrot.slane %v152, 2
  %v154 = vadd.f32 %v152, %v153
  %v155 = vrot.slane %v154, 1
  %v156 = vadd.f32 %v154, %v155
  %v157 = vadd.f32 %v85, %v101
  %v158 = vadd.f32 %v157, %v117
  %v159 = vadd.f32 %v158, %v133
  %v160 = vrot.slane %v159, 4
  %v161 = vadd.f32 %v159, %v160
  %v162 = vrot.slane %v161, 2
  %v163 = vadd.f32 %v161, %v162
  %v164 = vrot.slane %v163, 1
  %v165 = vadd.f32 %v163, %v164
  %v166 = vadd.f32 %v86, %v102
  %v167 = vadd.f32 %v166, %v118
  %v168 = vadd.f32 %v167, %v134
  %v169 = vrot.slane %v168, 4
  %v170 = vadd.f32 %v168, %v169
  %v171 = vrot.slane %v170, 2
  %v172 = vadd.f32 %v170, %v171
  %v173 = vrot.slane %v172, 1
  %v174 = vadd.f32 %v172, %v173
  %v175 = vadd.f32 %v87, %v103
  %v176 = vadd.f32 %v175, %v119
  %v177 = vadd.f32 %v176, %v135
  %v178 = vrot.slane %v177, 4
  %v179 = vadd.f32 %v177, %v178
  %v180 = vrot.slane %v179, 2
  %v181 = vadd.f32 %v179, %v180
  %v182 = vrot.slane %v181, 1
  %v183 = vadd.f32 %v181, %v182
  %v184 = vadd.f32 %v88, %v104
  %v185 = vadd.f32 %v184, %v120
  %v186 = vadd.f32 %v185, %v136
  %v187 = vrot.slane %v186, 4
  %v188 = vadd.f32 %v186, %v187
  %v189 = vrot.slane %v188, 2
  %v190 = vadd.f32 %v188, %v189
  %v191 = vrot.slane %v190, 1
  %v192 = vadd.f32 %v190, %v191
  %v193 = vadd.f32 %v89, %v105
  %v194 = vadd.f32 %v193, %v121
  %v195 = vadd.f32 %v194, %v137
  %v196 = vrot.slane %v195, 4
  %v197 = vadd.f32 %v195, %v196
  %v198 = vrot.slane %v197, 2
  %v199 = vadd.f32 %v197, %v198
  %v200 = vrot.slane %v199, 1
  %v201 = vadd.f32 %v199, %v200
  %v202 = vadd.f32 %v90, %v106
  %v203 = vadd.f32 %v202, %v122
  %v204 = vadd.f32 %v203, %v138
  %v205 = vrot.slane %v204, 4
  %v206 = vadd.f32 %v204, %v205
  %v207 = vrot.slane %v206, 2
  %v208 = vadd.f32 %v206, %v207
  %v209 = vrot.slane %v208, 1
  %v210 = vadd.f32 %v208, %v209
  %v211 = vadd.f32 %v91, %v107
  %v212 = vadd.f32 %v211, %v123
  %v213 = vadd.f32 %v212, %v139
  %v214 = vrot.slane %v213, 4
  %v215 = vadd.f32 %v213, %v214
  %v216 = vrot.slane %v215, 2
  %v217 = vadd.f32 %v215, %v216
  %v218 = vrot.slane %v217, 1
  %v219 = vadd.f32 %v217, %v218
  %v220 = vadd.f32 %v92, %v108
  %v221 = vadd.f32 %v220, %v124
  %v222 = vadd.f32 %v221, %v140
  %v223 = vrot.slane %v222, 4
  %v224 = vadd.f32 %v222, %v223
  %v225 = vrot.slane %v224, 2
  %v226 = vadd.f32 %v224, %v225
  %v227 = vrot.slane %v226, 1
  %v228 = vadd.f32 %v226, %v227
  %v229 = vadd.f32 %v93, %v109
  %v230 = vadd.f32 %v229, %v125
  %v231 = vadd.f32 %v230, %v141
  %v232 = vrot.slane %v231, 4
  %v233 = vadd.f32 %v231, %v232
  %v234 = vrot.slane %v233, 2
  %v235 = vadd.f32 %v233, %v234
  %v236 = vrot.slane %v235, 1
  %v237 = vadd.f32 %v235, %v236
  %v238 = vadd.f32 %v94, %v110
  %v239 = vadd.f32 %v238, %v126
  %v240 = vadd.f32 %v239, %v142
  %v241 = vrot.slane %v240, 4
  %v242 = vadd.f32 %v240, %v241
  %v243 = vrot.slane %v242, 2
  %v244 = vadd.f32 %v242, %v243
  %v245 = vrot.slane %v244, 1
  %v246 = vadd.f32 %v244, %v245
  %v247 = vadd.f32 %v95, %v111
  %v248 = vadd.f32 %v247, %v127
  %v249 = vadd.f32 %v248, %v143
  %v250 = vrot.slane %v249, 4
  %v251 = vadd.f32 %v249, %v250
  %v252 = vrot.slane %v251, 2
  %v253 = vadd.f32 %v251, %v252
  %v254 = vrot.slane %v253, 1
  %v255 = vadd.f32 %v253, %v254
  %v256 = vadd.f32 %v96, %v112
  %v257 = vadd.f32 %v256, %v128
  %v258 = vadd.f32 %v257, %v144
  %v259 = vrot.slane %v258, 4
  %v260 = vadd.f32 %v258, %v259
  %v261 = vrot.slane %v260, 2
  %v262 = vadd.f32 %v260, %v261
  %v263 = vrot.slane %v262, 1
  %v264 = vadd.f32 %v262, %v263
  %v265 = vadd.f32 %v97, %v113
  %v266 = vadd.f32 %v265, %v129
  %v267 = vadd.f32 %v266, %v145
  %v268 = vrot.slane %v267, 4
  %v269 = vadd.f32 %v267, %v268
  %v270 = vrot.slane %v269, 2
  %v271 = vadd.f32 %v269, %v270
  %v272 = vrot.slane %v271, 1
  %v273 = vadd.f32 %v271, %v272
  %v274 = vadd.f32 %v98, %v114
  %v275 = vadd.f32 %v274, %v130
  %v276 = vadd.f32 %v275, %v146
  %v277 = vrot.slane %v276, 4
  %v278 = vadd.f32 %v276, %v277
  %v279 = vrot.slane %v278, 2
  %v280 = vadd.f32 %v278, %v279
  %v281 = vrot.slane %v280, 1
  %v282 = vadd.f32 %v280, %v281
  %v283 = vadd.f32 %v99, %v115
  %v284 = vadd.f32 %v283, %v131
  %v285 = vadd.f32 %v284, %v147
  %v286 = vrot.slane %v285, 4
  %v287 = vadd.f32 %v285, %v286
  %v288 = vrot.slane %v287, 2
  %v289 = vadd.f32 %v287, %v288
  %v290 = vrot.slane %v289, 1
  %v291 = vadd.f32 %v289, %v290
  %v292 = vmax.f32 %v156, 1e-24
  %v293 = vmax.f32 %v165, 1e-24
  %v294 = vmax.f32 %v174, 1e-24
  %v295 = vmax.f32 %v183, 1e-24
  %v296 = vmax.f32 %v192, 1e-24
  %v297 = vmax.f32 %v201, 1e-24
  %v298 = vmax.f32 %v210, 1e-24
  %v299 = vmax.f32 %v219, 1e-24
  %v300 = vmax.f32 %v228, 1e-24
  %v301 = vmax.f32 %v237, 1e-24
  %v302 = vmax.f32 %v246, 1e-24
  %v303 = vmax.f32 %v255, 1e-24
  %v304 = vmax.f32 %v264, 1e-24
  %v305 = vmax.f32 %v273, 1e-24
  %v306 = vmax.f32 %v282, 1e-24
  %v307 = vmax.f32 %v291, 1e-24
  %v308 = vrsqrt.pop %v292
  %v309 = vrsqrt.pop %v293
  %v310 = vrsqrt.pop %v294
  %v311 = vrsqrt.pop %v295
  %v312 = vrsqrt.pop %v296
  %v313 = vrsqrt.pop %v297
  %v314 = vrsqrt.pop %v298
  %v315 = vrsqrt.pop %v299
  %v316 = vrsqrt.pop %v300
  %v317 = vrsqrt.pop %v301
  %v318 = vrsqrt.pop %v302
  %v319 = vrsqrt.pop %v303
  %v320 = vrsqrt.pop %v304
  %v321 = vrsqrt.pop %v305
  %v322 = vrsqrt.pop %v306
  %v323 = vrsqrt.pop %v307
  %v324 = vmul.f32 %v308, %v308
  %v325 = vmul.f32 %v309, %v309
  %v326 = vmul.f32 %v310, %v310
  %v327 = vmul.f32 %v311, %v311
  %v328 = vmul.f32 %v312, %v312
  %v329 = vmul.f32 %v313, %v313
  %v330 = vmul.f32 %v314, %v314
  %v331 = vmul.f32 %v315, %v315
  %v332 = vmul.f32 %v316, %v316
  %v333 = vmul.f32 %v317, %v317
  %v334 = vmul.f32 %v318, %v318
  %v335 = vmul.f32 %v319, %v319
  %v336 = vmul.f32 %v320, %v320
  %v337 = vmul.f32 %v321, %v321
  %v338 = vmul.f32 %v322, %v322
  %v339 = vmul.f32 %v323, %v323
  %v340 = vld [vmem:[%s0] sm:$0xff]
  %v341 = vld [vmem:[%s1] sm:$0xff]
  %vm342 = vcmask 261120
  %v344 = vsel %vm342, %v340, 0
  %346 = vmatprep.subr.mxu0 0.0
  %347 = vmatpush1.msra.mxu0 0.0
  %348 = vmatprep.subr.mxu0 0.0
  %349 = vmatpush1.msra.mxu0 0.0
  %350 = vmatprep.subr.mxu0 0.0
  %351 = vmatpush1.msra.mxu0 0.0
  %352 = vmatprep.subr.mxu0 0.0
  %353 = vmatpush1.msra.mxu0 0.0
  %354 = vmatprep.subr.mxu0 0.0
  %355 = vmatpush1.msra.mxu0 0.0
  %356 = vmatprep.subr.mxu0 0.0
  %357 = vmatpush1.msra.mxu0 0.0
  %358 = vmatprep.subr.mxu0 0.0
  %359 = vmatpush1.msra.mxu0 0.0
  %360 = vmatprep.subr.mxu0 0.0
  %361 = vmatpush1.msra.mxu0 0.0
  %362 = vmatprep.subr.mxu0 0.0
  %363 = vmatpush1.msra.mxu0 0.0
  %364 = vmatprep.subr.mxu0 0.0
  %365 = vmatpush1.msra.mxu0 0.0
  %366 = vmatprep.subr.mxu0 0.0
  %367 = vmatpush1.msra.mxu0 0.0
  %368 = vmatprep.subr.mxu0 0.0
  %369 = vmatpush1.msra.mxu0 0.0
  %370 = vmatprep.subr.mxu0 %v69
  %371 = vmatpush1.msra.mxu0 %v68
  %372 = vmatprep.subr.mxu0 %v53
  %373 = vmatpush1.msra.mxu0 %v52
  %374 = vmatprep.subr.mxu0 %v37
  %375 = vmatpush1.msra.mxu0 %v36
  %376 = vmatprep.subr.mxu0 %v21
  %377 = vmatpush1.msra.mxu0 %v20
  %378 = vmatprep.subr.mxu0 0.0
  %379 = vmatpush2.msra.mxu0 0.0
  %380 = vmatprep.subr.mxu0 0.0
  %381 = vmatpush2.msra.mxu0 0.0
  %382 = vmatprep.subr.mxu0 0.0
  %383 = vmatpush2.msra.mxu0 0.0
  %384 = vmatprep.subr.mxu0 0.0
  %385 = vmatpush2.msra.mxu0 0.0
  %386 = vmatprep.subr.mxu0 0.0
  %387 = vmatpush2.msra.mxu0 0.0
  %388 = vmatprep.subr.mxu0 0.0
  %389 = vmatpush2.msra.mxu0 0.0
  %390 = vmatprep.subr.mxu0 0.0
  %391 = vmatpush2.msra.mxu0 0.0
  %392 = vmatprep.subr.mxu0 0.0
  %393 = vmatpush2.msra.mxu0 0.0
  %394 = vmatprep.subr.mxu0 0.0
  %395 = vmatpush2.msra.mxu0 0.0
  %396 = vmatprep.subr.mxu0 0.0
  %397 = vmatpush2.msra.mxu0 0.0
  %398 = vmatprep.subr.mxu0 0.0
  %399 = vmatpush2.msra.mxu0 0.0
  %400 = vmatprep.subr.mxu0 0.0
  %401 = vmatpush2.msra.mxu0 0.0
  %402 = vmatprep.subr.mxu0 0.0
  %403 = vmatpush2.msra.mxu0 0.0
  %404 = vmatprep.subr.mxu0 0.0
  %405 = vmatpush2.msra.mxu0 0.0
  %406 = vmatprep.subr.mxu0 0.0
  %407 = vmatpush2.msra.mxu0 0.0
  %408 = vmatprep.subr.mxu0 0.0
  %409 = vmatpush2.msra.mxu0 0.0
  %410 = vmatprep.mubr.f32.mxu0 0.0
  %411 = vmatmul.mubr.f32.gmra.mxu0 %v344
  %v412 = vpop.f32.mrf.mxu0
  %v413 = vadd.f32 0.0, %v412
  %v414 = vpop.f32.mrf.mxu0
  %v415 = vadd.f32 0.0, %v414
  %416 = vdwg.mxu0
  %417 = vmatprep.subr.mxu0 0.0
  %418 = vmatpush1.msra.mxu0 0.0
  %419 = vmatprep.subr.mxu0 0.0
  %420 = vmatpush1.msra.mxu0 0.0
  %421 = vmatprep.subr.mxu0 0.0
  %422 = vmatpush1.msra.mxu0 0.0
  %423 = vmatprep.subr.mxu0 0.0
  %424 = vmatpush1.msra.mxu0 0.0
  %425 = vmatprep.subr.mxu0 0.0
  %426 = vmatpush1.msra.mxu0 0.0
  %427 = vmatprep.subr.mxu0 0.0
  %428 = vmatpush1.msra.mxu0 0.0
  %429 = vmatprep.subr.mxu0 0.0
  %430 = vmatpush1.msra.mxu0 0.0
  %431 = vmatprep.subr.mxu0 0.0
  %432 = vmatpush1.msra.mxu0 0.0
  %433 = vmatprep.subr.mxu0 0.0
  %434 = vmatpush1.msra.mxu0 0.0
  %435 = vmatprep.subr.mxu0 0.0
  %436 = vmatpush1.msra.mxu0 0.0
  %437 = vmatprep.subr.mxu0 0.0
  %438 = vmatpush1.msra.mxu0 0.0
  %439 = vmatprep.subr.mxu0 0.0
  %440 = vmatpush1.msra.mxu0 0.0
  %441 = vmatprep.subr.mxu0 %v71
  %442 = vmatpush1.msra.mxu0 %v70
  %443 = vmatprep.subr.mxu0 %v55
  %444 = vmatpush1.msra.mxu0 %v54
  %445 = vmatprep.subr.mxu0 %v39
  %446 = vmatpush1.msra.mxu0 %v38
  %447 = vmatprep.subr.mxu0 %v23
  %448 = vmatpush1.msra.mxu0 %v22
  %449 = vmatprep.subr.mxu0 0.0
  %450 = vmatpush2.msra.mxu0 0.0
  %451 = vmatprep.subr.mxu0 0.0
  %452 = vmatpush2.msra.mxu0 0.0
  %453 = vmatprep.subr.mxu0 0.0
  %454 = vmatpush2.msra.mxu0 0.0
  %455 = vmatprep.subr.mxu0 0.0
  %456 = vmatpush2.msra.mxu0 0.0
  %457 = vmatprep.subr.mxu0 0.0
  %458 = vmatpush2.msra.mxu0 0.0
  %459 = vmatprep.subr.mxu0 0.0
  %460 = vmatpush2.msra.mxu0 0.0
  %461 = vmatprep.subr.mxu0 0.0
  %462 = vmatpush2.msra.mxu0 0.0
  %463 = vmatprep.subr.mxu0 0.0
  %464 = vmatpush2.msra.mxu0 0.0
  %465 = vmatprep.subr.mxu0 0.0
  %466 = vmatpush2.msra.mxu0 0.0
  %467 = vmatprep.subr.mxu0 0.0
  %468 = vmatpush2.msra.mxu0 0.0
  %469 = vmatprep.subr.mxu0 0.0
  %470 = vmatpush2.msra.mxu0 0.0
  %471 = vmatprep.subr.mxu0 0.0
  %472 = vmatpush2.msra.mxu0 0.0
  %473 = vmatprep.subr.mxu0 0.0
  %474 = vmatpush2.msra.mxu0 0.0
  %475 = vmatprep.subr.mxu0 0.0
  %476 = vmatpush2.msra.mxu0 0.0
  %477 = vmatprep.subr.mxu0 0.0
  %478 = vmatpush2.msra.mxu0 0.0
  %479 = vmatprep.subr.mxu0 0.0
  %480 = vmatpush2.msra.mxu0 0.0
  %481 = vmatprep.mubr.f32.mxu0 0.0
  %482 = vmatmul.mubr.f32.gmra.mxu0 %v344
  %v483 = vpop.f32.mrf.mxu0
  %v484 = vadd.f32 0.0, %v483
  %v485 = vpop.f32.mrf.mxu0
  %v486 = vadd.f32 0.0, %v485
  %487 = vdwg.mxu0
  %488 = vmatprep.subr.mxu0 0.0
  %489 = vmatpush1.msra.mxu0 0.0
  %490 = vmatprep.subr.mxu0 0.0
  %491 = vmatpush1.msra.mxu0 0.0
  %492 = vmatprep.subr.mxu0 0.0
  %493 = vmatpush1.msra.mxu0 0.0
  %494 = vmatprep.subr.mxu0 0.0
  %495 = vmatpush1.msra.mxu0 0.0
  %496 = vmatprep.subr.mxu0 0.0
  %497 = vmatpush1.msra.mxu0 0.0
  %498 = vmatprep.subr.mxu0 0.0
  %499 = vmatpush1.msra.mxu0 0.0
  %500 = vmatprep.subr.mxu0 0.0
  %501 = vmatpush1.msra.mxu0 0.0
  %502 = vmatprep.subr.mxu0 0.0
  %503 = vmatpush1.msra.mxu0 0.0
  %504 = vmatprep.subr.mxu0 0.0
  %505 = vmatpush1.msra.mxu0 0.0
  %506 = vmatprep.subr.mxu0 0.0
  %507 = vmatpush1.msra.mxu0 0.0
  %508 = vmatprep.subr.mxu0 0.0
  %509 = vmatpush1.msra.mxu0 0.0
  %510 = vmatprep.subr.mxu0 0.0
  %511 = vmatpush1.msra.mxu0 0.0
  %512 = vmatprep.subr.mxu0 %v73
  %513 = vmatpush1.msra.mxu0 %v72
  %514 = vmatprep.subr.mxu0 %v57
  %515 = vmatpush1.msra.mxu0 %v56
  %516 = vmatprep.subr.mxu0 %v41
  %517 = vmatpush1.msra.mxu0 %v40
  %518 = vmatprep.subr.mxu0 %v25
  %519 = vmatpush1.msra.mxu0 %v24
  %520 = vmatprep.subr.mxu0 0.0
  %521 = vmatpush2.msra.mxu0 0.0
  %522 = vmatprep.subr.mxu0 0.0
  %523 = vmatpush2.msra.mxu0 0.0
  %524 = vmatprep.subr.mxu0 0.0
  %525 = vmatpush2.msra.mxu0 0.0
  %526 = vmatprep.subr.mxu0 0.0
  %527 = vmatpush2.msra.mxu0 0.0
  %528 = vmatprep.subr.mxu0 0.0
  %529 = vmatpush2.msra.mxu0 0.0
  %530 = vmatprep.subr.mxu0 0.0
  %531 = vmatpush2.msra.mxu0 0.0
  %532 = vmatprep.subr.mxu0 0.0
  %533 = vmatpush2.msra.mxu0 0.0
  %534 = vmatprep.subr.mxu0 0.0
  %535 = vmatpush2.msra.mxu0 0.0
  %536 = vmatprep.subr.mxu0 0.0
  %537 = vmatpush2.msra.mxu0 0.0
  %538 = vmatprep.subr.mxu0 0.0
  %539 = vmatpush2.msra.mxu0 0.0
  %540 = vmatprep.subr.mxu0 0.0
  %541 = vmatpush2.msra.mxu0 0.0
  %542 = vmatprep.subr.mxu0 0.0
  %543 = vmatpush2.msra.mxu0 0.0
  %544 = vmatprep.subr.mxu0 0.0
  %545 = vmatpush2.msra.mxu0 0.0
  %546 = vmatprep.subr.mxu0 0.0
  %547 = vmatpush2.msra.mxu0 0.0
  %548 = vmatprep.subr.mxu0 0.0
  %549 = vmatpush2.msra.mxu0 0.0
  %550 = vmatprep.subr.mxu0 0.0
  %551 = vmatpush2.msra.mxu0 0.0
  %552 = vmatprep.mubr.f32.mxu0 0.0
  %553 = vmatmul.mubr.f32.gmra.mxu0 %v344
  %v554 = vpop.f32.mrf.mxu0
  %v555 = vadd.f32 0.0, %v554
  %v556 = vpop.f32.mrf.mxu0
  %v557 = vadd.f32 0.0, %v556
  %558 = vdwg.mxu0
  %559 = vmatprep.subr.mxu0 0.0
  %560 = vmatpush1.msra.mxu0 0.0
  %561 = vmatprep.subr.mxu0 0.0
  %562 = vmatpush1.msra.mxu0 0.0
  %563 = vmatprep.subr.mxu0 0.0
  %564 = vmatpush1.msra.mxu0 0.0
  %565 = vmatprep.subr.mxu0 0.0
  %566 = vmatpush1.msra.mxu0 0.0
  %567 = vmatprep.subr.mxu0 0.0
  %568 = vmatpush1.msra.mxu0 0.0
  %569 = vmatprep.subr.mxu0 0.0
  %570 = vmatpush1.msra.mxu0 0.0
  %571 = vmatprep.subr.mxu0 0.0
  %572 = vmatpush1.msra.mxu0 0.0
  %573 = vmatprep.subr.mxu0 0.0
  %574 = vmatpush1.msra.mxu0 0.0
  %575 = vmatprep.subr.mxu0 0.0
  %576 = vmatpush1.msra.mxu0 0.0
  %577 = vmatprep.subr.mxu0 0.0
  %578 = vmatpush1.msra.mxu0 0.0
  %579 = vmatprep.subr.mxu0 0.0
  %580 = vmatpush1.msra.mxu0 0.0
  %581 = vmatprep.subr.mxu0 0.0
  %582 = vmatpush1.msra.mxu0 0.0
  %583 = vmatprep.subr.mxu0 %v75
  %584 = vmatpush1.msra.mxu0 %v74
  %585 = vmatprep.subr.mxu0 %v59
  %586 = vmatpush1.msra.mxu0 %v58
  %587 = vmatprep.subr.mxu0 %v43
  %588 = vmatpush1.msra.mxu0 %v42
  %589 = vmatprep.subr.mxu0 %v27
  %590 = vmatpush1.msra.mxu0 %v26
  %591 = vmatprep.subr.mxu0 0.0
  %592 = vmatpush2.msra.mxu0 0.0
  %593 = vmatprep.subr.mxu0 0.0
  %594 = vmatpush2.msra.mxu0 0.0
  %595 = vmatprep.subr.mxu0 0.0
  %596 = vmatpush2.msra.mxu0 0.0
  %597 = vmatprep.subr.mxu0 0.0
  %598 = vmatpush2.msra.mxu0 0.0
  %599 = vmatprep.subr.mxu0 0.0
  %600 = vmatpush2.msra.mxu0 0.0
  %601 = vmatprep.subr.mxu0 0.0
  %602 = vmatpush2.msra.mxu0 0.0
  %603 = vmatprep.subr.mxu0 0.0
  %604 = vmatpush2.msra.mxu0 0.0
  %605 = vmatprep.subr.mxu0 0.0
  %606 = vmatpush2.msra.mxu0 0.0
  %607 = vmatprep.subr.mxu0 0.0
  %608 = vmatpush2.msra.mxu0 0.0
  %609 = vmatprep.subr.mxu0 0.0
  %610 = vmatpush2.msra.mxu0 0.0
  %611 = vmatprep.subr.mxu0 0.0
  %612 = vmatpush2.msra.mxu0 0.0
  %613 = vmatprep.subr.mxu0 0.0
  %614 = vmatpush2.msra.mxu0 0.0
  %615 = vmatprep.subr.mxu0 0.0
  %616 = vmatpush2.msra.mxu0 0.0
  %617 = vmatprep.subr.mxu0 0.0
  %618 = vmatpush2.msra.mxu0 0.0
  %619 = vmatprep.subr.mxu0 0.0
  %620 = vmatpush2.msra.mxu0 0.0
  %621 = vmatprep.subr.mxu0 0.0
  %622 = vmatpush2.msra.mxu0 0.0
  %623 = vmatprep.mubr.f32.mxu0 0.0
  %624 = vmatmul.mubr.f32.gmra.mxu0 %v344
  %v625 = vpop.f32.mrf.mxu0
  %v626 = vadd.f32 0.0, %v625
  %v627 = vpop.f32.mrf.mxu0
  %v628 = vadd.f32 0.0, %v627
  %629 = vdwg.mxu0
  %630 = vmatprep.subr.mxu0 0.0
  %631 = vmatpush1.msra.mxu0 0.0
  %632 = vmatprep.subr.mxu0 0.0
  %633 = vmatpush1.msra.mxu0 0.0
  %634 = vmatprep.subr.mxu0 0.0
  %635 = vmatpush1.msra.mxu0 0.0
  %636 = vmatprep.subr.mxu0 0.0
  %637 = vmatpush1.msra.mxu0 0.0
  %638 = vmatprep.subr.mxu0 0.0
  %639 = vmatpush1.msra.mxu0 0.0
  %640 = vmatprep.subr.mxu0 0.0
  %641 = vmatpush1.msra.mxu0 0.0
  %642 = vmatprep.subr.mxu0 0.0
  %643 = vmatpush1.msra.mxu0 0.0
  %644 = vmatprep.subr.mxu0 0.0
  %645 = vmatpush1.msra.mxu0 0.0
  %646 = vmatprep.subr.mxu0 0.0
  %647 = vmatpush1.msra.mxu0 0.0
  %648 = vmatprep.subr.mxu0 0.0
  %649 = vmatpush1.msra.mxu0 0.0
  %650 = vmatprep.subr.mxu0 0.0
  %651 = vmatpush1.msra.mxu0 0.0
  %652 = vmatprep.subr.mxu0 0.0
  %653 = vmatpush1.msra.mxu0 0.0
  %654 = vmatprep.subr.mxu0 %v77
  %655 = vmatpush1.msra.mxu0 %v76
  %656 = vmatprep.subr.mxu0 %v61
  %657 = vmatpush1.msra.mxu0 %v60
  %658 = vmatprep.subr.mxu0 %v45
  %659 = vmatpush1.msra.mxu0 %v44
  %660 = vmatprep.subr.mxu0 %v29
  %661 = vmatpush1.msra.mxu0 %v28
  %662 = vmatprep.subr.mxu0 0.0
  %663 = vmatpush2.msra.mxu0 0.0
  %664 = vmatprep.subr.mxu0 0.0
  %665 = vmatpush2.msra.mxu0 0.0
  %666 = vmatprep.subr.mxu0 0.0
  %667 = vmatpush2.msra.mxu0 0.0
  %668 = vmatprep.subr.mxu0 0.0
  %669 = vmatpush2.msra.mxu0 0.0
  %670 = vmatprep.subr.mxu0 0.0
  %671 = vmatpush2.msra.mxu0 0.0
  %672 = vmatprep.subr.mxu0 0.0
  %673 = vmatpush2.msra.mxu0 0.0
  %674 = vmatprep.subr.mxu0 0.0
  %675 = vmatpush2.msra.mxu0 0.0
  %676 = vmatprep.subr.mxu0 0.0
  %677 = vmatpush2.msra.mxu0 0.0
  %678 = vmatprep.subr.mxu0 0.0
  %679 = vmatpush2.msra.mxu0 0.0
  %680 = vmatprep.subr.mxu0 0.0
  %681 = vmatpush2.msra.mxu0 0.0
  %682 = vmatprep.subr.mxu0 0.0
  %683 = vmatpush2.msra.mxu0 0.0
  %684 = vmatprep.subr.mxu0 0.0
  %685 = vmatpush2.msra.mxu0 0.0
  %686 = vmatprep.subr.mxu0 0.0
  %687 = vmatpush2.msra.mxu0 0.0
  %688 = vmatprep.subr.mxu0 0.0
  %689 = vmatpush2.msra.mxu0 0.0
  %690 = vmatprep.subr.mxu0 0.0
  %691 = vmatpush2.msra.mxu0 0.0
  %692 = vmatprep.subr.mxu0 0.0
  %693 = vmatpush2.msra.mxu0 0.0
  %694 = vmatprep.mubr.f32.mxu0 0.0
  %695 = vmatmul.mubr.f32.gmra.mxu0 %v344
  %v696 = vpop.f32.mrf.mxu0
  %v697 = vadd.f32 0.0, %v696
  %v698 = vpop.f32.mrf.mxu0
  %v699 = vadd.f32 0.0, %v698
  %700 = vdwg.mxu0
  %701 = vmatprep.subr.mxu0 0.0
  %702 = vmatpush1.msra.mxu0 0.0
  %703 = vmatprep.subr.mxu0 0.0
  %704 = vmatpush1.msra.mxu0 0.0
  %705 = vmatprep.subr.mxu0 0.0
  %706 = vmatpush1.msra.mxu0 0.0
  %707 = vmatprep.subr.mxu0 0.0
  %708 = vmatpush1.msra.mxu0 0.0
  %709 = vmatprep.subr.mxu0 0.0
  %710 = vmatpush1.msra.mxu0 0.0
  %711 = vmatprep.subr.mxu0 0.0
  %712 = vmatpush1.msra.mxu0 0.0
  %713 = vmatprep.subr.mxu0 0.0
  %714 = vmatpush1.msra.mxu0 0.0
  %715 = vmatprep.subr.mxu0 0.0
  %716 = vmatpush1.msra.mxu0 0.0
  %717 = vmatprep.subr.mxu0 0.0
  %718 = vmatpush1.msra.mxu0 0.0
  %719 = vmatprep.subr.mxu0 0.0
  %720 = vmatpush1.msra.mxu0 0.0
  %721 = vmatprep.subr.mxu0 0.0
  %722 = vmatpush1.msra.mxu0 0.0
  %723 = vmatprep.subr.mxu0 0.0
  %724 = vmatpush1.msra.mxu0 0.0
  %725 = vmatprep.subr.mxu0 %v79
  %726 = vmatpush1.msra.mxu0 %v78
  %727 = vmatprep.subr.mxu0 %v63
  %728 = vmatpush1.msra.mxu0 %v62
  %729 = vmatprep.subr.mxu0 %v47
  %730 = vmatpush1.msra.mxu0 %v46
  %731 = vmatprep.subr.mxu0 %v31
  %732 = vmatpush1.msra.mxu0 %v30
  %733 = vmatprep.subr.mxu0 0.0
  %734 = vmatpush2.msra.mxu0 0.0
  %735 = vmatprep.subr.mxu0 0.0
  %736 = vmatpush2.msra.mxu0 0.0
  %737 = vmatprep.subr.mxu0 0.0
  %738 = vmatpush2.msra.mxu0 0.0
  %739 = vmatprep.subr.mxu0 0.0
  %740 = vmatpush2.msra.mxu0 0.0
  %741 = vmatprep.subr.mxu0 0.0
  %742 = vmatpush2.msra.mxu0 0.0
  %743 = vmatprep.subr.mxu0 0.0
  %744 = vmatpush2.msra.mxu0 0.0
  %745 = vmatprep.subr.mxu0 0.0
  %746 = vmatpush2.msra.mxu0 0.0
  %747 = vmatprep.subr.mxu0 0.0
  %748 = vmatpush2.msra.mxu0 0.0
  %749 = vmatprep.subr.mxu0 0.0
  %750 = vmatpush2.msra.mxu0 0.0
  %751 = vmatprep.subr.mxu0 0.0
  %752 = vmatpush2.msra.mxu0 0.0
  %753 = vmatprep.subr.mxu0 0.0
  %754 = vmatpush2.msra.mxu0 0.0
  %755 = vmatprep.subr.mxu0 0.0
  %756 = vmatpush2.msra.mxu0 0.0
  %757 = vmatprep.subr.mxu0 0.0
  %758 = vmatpush2.msra.mxu0 0.0
  %759 = vmatprep.subr.mxu0 0.0
  %760 = vmatpush2.msra.mxu0 0.0
  %761 = vmatprep.subr.mxu0 0.0
  %762 = vmatpush2.msra.mxu0 0.0
  %763 = vmatprep.subr.mxu0 0.0
  %764 = vmatpush2.msra.mxu0 0.0
  %765 = vmatprep.mubr.f32.mxu0 0.0
  %766 = vmatmul.mubr.f32.gmra.mxu0 %v344
  %v767 = vpop.f32.mrf.mxu0
  %v768 = vadd.f32 0.0, %v767
  %v769 = vpop.f32.mrf.mxu0
  %v770 = vadd.f32 0.0, %v769
  %771 = vdwg.mxu0
  %772 = vmatprep.subr.mxu0 0.0
  %773 = vmatpush1.msra.mxu0 0.0
  %774 = vmatprep.subr.mxu0 0.0
  %775 = vmatpush1.msra.mxu0 0.0
  %776 = vmatprep.subr.mxu0 0.0
  %777 = vmatpush1.msra.mxu0 0.0
  %778 = vmatprep.subr.mxu0 0.0
  %779 = vmatpush1.msra.mxu0 0.0
  %780 = vmatprep.subr.mxu0 0.0
  %781 = vmatpush1.msra.mxu0 0.0
  %782 = vmatprep.subr.mxu0 0.0
  %783 = vmatpush1.msra.mxu0 0.0
  %784 = vmatprep.subr.mxu0 0.0
  %785 = vmatpush1.msra.mxu0 0.0
  %786 = vmatprep.subr.mxu0 0.0
  %787 = vmatpush1.msra.mxu0 0.0
  %788 = vmatprep.subr.mxu0 0.0
  %789 = vmatpush1.msra.mxu0 0.0
  %790 = vmatprep.subr.mxu0 0.0
  %791 = vmatpush1.msra.mxu0 0.0
  %792 = vmatprep.subr.mxu0 0.0
  %793 = vmatpush1.msra.mxu0 0.0
  %794 = vmatprep.subr.mxu0 0.0
  %795 = vmatpush1.msra.mxu0 0.0
  %796 = vmatprep.subr.mxu0 %v81
  %797 = vmatpush1.msra.mxu0 %v80
  %798 = vmatprep.subr.mxu0 %v65
  %799 = vmatpush1.msra.mxu0 %v64
  %800 = vmatprep.subr.mxu0 %v49
  %801 = vmatpush1.msra.mxu0 %v48
  %802 = vmatprep.subr.mxu0 %v33
  %803 = vmatpush1.msra.mxu0 %v32
  %804 = vmatprep.subr.mxu0 0.0
  %805 = vmatpush2.msra.mxu0 0.0
  %806 = vmatprep.subr.mxu0 0.0
  %807 = vmatpush2.msra.mxu0 0.0
  %808 = vmatprep.subr.mxu0 0.0
  %809 = vmatpush2.msra.mxu0 0.0
  %810 = vmatprep.subr.mxu0 0.0
  %811 = vmatpush2.msra.mxu0 0.0
  %812 = vmatprep.subr.mxu0 0.0
  %813 = vmatpush2.msra.mxu0 0.0
  %814 = vmatprep.subr.mxu0 0.0
  %815 = vmatpush2.msra.mxu0 0.0
  %816 = vmatprep.subr.mxu0 0.0
  %817 = vmatpush2.msra.mxu0 0.0
  %818 = vmatprep.subr.mxu0 0.0
  %819 = vmatpush2.msra.mxu0 0.0
  %820 = vmatprep.subr.mxu0 0.0
  %821 = vmatpush2.msra.mxu0 0.0
  %822 = vmatprep.subr.mxu0 0.0
  %823 = vmatpush2.msra.mxu0 0.0
  %824 = vmatprep.subr.mxu0 0.0
  %825 = vmatpush2.msra.mxu0 0.0
  %826 = vmatprep.subr.mxu0 0.0
  %827 = vmatpush2.msra.mxu0 0.0
  %828 = vmatprep.subr.mxu0 0.0
  %829 = vmatpush2.msra.mxu0 0.0
  %830 = vmatprep.subr.mxu0 0.0
  %831 = vmatpush2.msra.mxu0 0.0
  %832 = vmatprep.subr.mxu0 0.0
  %833 = vmatpush2.msra.mxu0 0.0
  %834 = vmatprep.subr.mxu0 0.0
  %835 = vmatpush2.msra.mxu0 0.0
  %836 = vmatprep.mubr.f32.mxu0 0.0
  %837 = vmatmul.mubr.f32.gmra.mxu0 %v344
  %v838 = vpop.f32.mrf.mxu0
  %v839 = vadd.f32 0.0, %v838
  %v840 = vpop.f32.mrf.mxu0
  %v841 = vadd.f32 0.0, %v840
  %842 = vdwg.mxu0
  %843 = vmatprep.subr.mxu0 0.0
  %844 = vmatpush1.msra.mxu0 0.0
  %845 = vmatprep.subr.mxu0 0.0
  %846 = vmatpush1.msra.mxu0 0.0
  %847 = vmatprep.subr.mxu0 0.0
  %848 = vmatpush1.msra.mxu0 0.0
  %849 = vmatprep.subr.mxu0 0.0
  %850 = vmatpush1.msra.mxu0 0.0
  %851 = vmatprep.subr.mxu0 0.0
  %852 = vmatpush1.msra.mxu0 0.0
  %853 = vmatprep.subr.mxu0 0.0
  %854 = vmatpush1.msra.mxu0 0.0
  %855 = vmatprep.subr.mxu0 0.0
  %856 = vmatpush1.msra.mxu0 0.0
  %857 = vmatprep.subr.mxu0 0.0
  %858 = vmatpush1.msra.mxu0 0.0
  %859 = vmatprep.subr.mxu0 0.0
  %860 = vmatpush1.msra.mxu0 0.0
  %861 = vmatprep.subr.mxu0 0.0
  %862 = vmatpush1.msra.mxu0 0.0
  %863 = vmatprep.subr.mxu0 0.0
  %864 = vmatpush1.msra.mxu0 0.0
  %865 = vmatprep.subr.mxu0 0.0
  %866 = vmatpush1.msra.mxu0 0.0
  %867 = vmatprep.subr.mxu0 %v83
  %868 = vmatpush1.msra.mxu0 %v82
  %869 = vmatprep.subr.mxu0 %v67
  %870 = vmatpush1.msra.mxu0 %v66
  %871 = vmatprep.subr.mxu0 %v51
  %872 = vmatpush1.msra.mxu0 %v50
  %873 = vmatprep.subr.mxu0 %v35
  %874 = vmatpush1.msra.mxu0 %v34
  %875 = vmatprep.subr.mxu0 0.0
  %876 = vmatpush2.msra.mxu0 0.0
  %877 = vmatprep.subr.mxu0 0.0
  %878 = vmatpush2.msra.mxu0 0.0
  %879 = vmatprep.subr.mxu0 0.0
  %880 = vmatpush2.msra.mxu0 0.0
  %881 = vmatprep.subr.mxu0 0.0
  %882 = vmatpush2.msra.mxu0 0.0
  %883 = vmatprep.subr.mxu0 0.0
  %884 = vmatpush2.msra.mxu0 0.0
  %885 = vmatprep.subr.mxu0 0.0
  %886 = vmatpush2.msra.mxu0 0.0
  %887 = vmatprep.subr.mxu0 0.0
  %888 = vmatpush2.msra.mxu0 0.0
  %889 = vmatprep.subr.mxu0 0.0
  %890 = vmatpush2.msra.mxu0 0.0
  %891 = vmatprep.subr.mxu0 0.0
  %892 = vmatpush2.msra.mxu0 0.0
  %893 = vmatprep.subr.mxu0 0.0
  %894 = vmatpush2.msra.mxu0 0.0
  %895 = vmatprep.subr.mxu0 0.0
  %896 = vmatpush2.msra.mxu0 0.0
  %897 = vmatprep.subr.mxu0 0.0
  %898 = vmatpush2.msra.mxu0 0.0
  %899 = vmatprep.subr.mxu0 0.0
  %900 = vmatpush2.msra.mxu0 0.0
  %901 = vmatprep.subr.mxu0 0.0
  %902 = vmatpush2.msra.mxu0 0.0
  %903 = vmatprep.subr.mxu0 0.0
  %904 = vmatpush2.msra.mxu0 0.0
  %905 = vmatprep.subr.mxu0 0.0
  %906 = vmatpush2.msra.mxu0 0.0
  %907 = vmatprep.mubr.f32.mxu0 0.0
  %908 = vmatmul.mubr.f32.gmra.mxu0 %v344
  %v909 = vpop.f32.mrf.mxu0
  %v910 = vadd.f32 0.0, %v909
  %v911 = vpop.f32.mrf.mxu0
  %v912 = vadd.f32 0.0, %v911
  %913 = vdwg.mxu0
  %v914 = vmul.f32 %v413, %v308
  %v915 = vmul.f32 %v415, %v309
  %v916 = vmul.f32 %v484, %v310
  %v917 = vmul.f32 %v486, %v311
  %v918 = vmul.f32 %v555, %v312
  %v919 = vmul.f32 %v557, %v313
  %v920 = vmul.f32 %v626, %v314
  %v921 = vmul.f32 %v628, %v315
  %v922 = vmul.f32 %v697, %v316
  %v923 = vmul.f32 %v699, %v317
  %v924 = vmul.f32 %v768, %v318
  %v925 = vmul.f32 %v770, %v319
  %v926 = vmul.f32 %v839, %v320
  %v927 = vmul.f32 %v841, %v321
  %v928 = vmul.f32 %v910, %v322
  %v929 = vmul.f32 %v912, %v323
  %v931 = vsel %vm342, %v341, 0
  %933 = vmatprep.subr.mxu0 0.0
  %934 = vmatpush1.msra.mxu0 0.0
  %935 = vmatprep.subr.mxu0 0.0
  %936 = vmatpush1.msra.mxu0 0.0
  %937 = vmatprep.subr.mxu0 0.0
  %938 = vmatpush1.msra.mxu0 0.0
  %939 = vmatprep.subr.mxu0 0.0
  %940 = vmatpush1.msra.mxu0 0.0
  %941 = vmatprep.subr.mxu0 0.0
  %942 = vmatpush1.msra.mxu0 0.0
  %943 = vmatprep.subr.mxu0 0.0
  %944 = vmatpush1.msra.mxu0 0.0
  %945 = vmatprep.subr.mxu0 0.0
  %946 = vmatpush1.msra.mxu0 0.0
  %947 = vmatprep.subr.mxu0 0.0
  %948 = vmatpush1.msra.mxu0 0.0
  %949 = vmatprep.subr.mxu0 0.0
  %950 = vmatpush1.msra.mxu0 0.0
  %951 = vmatprep.subr.mxu0 0.0
  %952 = vmatpush1.msra.mxu0 0.0
  %953 = vmatprep.subr.mxu0 0.0
  %954 = vmatpush1.msra.mxu0 0.0
  %955 = vmatprep.subr.mxu0 0.0
  %956 = vmatpush1.msra.mxu0 0.0
  %957 = vmatprep.subr.mxu0 %v133
  %958 = vmatpush1.msra.mxu0 %v132
  %959 = vmatprep.subr.mxu0 %v117
  %960 = vmatpush1.msra.mxu0 %v116
  %961 = vmatprep.subr.mxu0 %v101
  %962 = vmatpush1.msra.mxu0 %v100
  %963 = vmatprep.subr.mxu0 %v85
  %964 = vmatpush1.msra.mxu0 %v84
  %965 = vmatprep.subr.mxu0 0.0
  %966 = vmatpush2.msra.mxu0 0.0
  %967 = vmatprep.subr.mxu0 0.0
  %968 = vmatpush2.msra.mxu0 0.0
  %969 = vmatprep.subr.mxu0 0.0
  %970 = vmatpush2.msra.mxu0 0.0
  %971 = vmatprep.subr.mxu0 0.0
  %972 = vmatpush2.msra.mxu0 0.0
  %973 = vmatprep.subr.mxu0 0.0
  %974 = vmatpush2.msra.mxu0 0.0
  %975 = vmatprep.subr.mxu0 0.0
  %976 = vmatpush2.msra.mxu0 0.0
  %977 = vmatprep.subr.mxu0 0.0
  %978 = vmatpush2.msra.mxu0 0.0
  %979 = vmatprep.subr.mxu0 0.0
  %980 = vmatpush2.msra.mxu0 0.0
  %981 = vmatprep.subr.mxu0 0.0
  %982 = vmatpush2.msra.mxu0 0.0
  %983 = vmatprep.subr.mxu0 0.0
  %984 = vmatpush2.msra.mxu0 0.0
  %985 = vmatprep.subr.mxu0 0.0
  %986 = vmatpush2.msra.mxu0 0.0
  %987 = vmatprep.subr.mxu0 0.0
  %988 = vmatpush2.msra.mxu0 0.0
  %989 = vmatprep.subr.mxu0 0.0
  %990 = vmatpush2.msra.mxu0 0.0
  %991 = vmatprep.subr.mxu0 0.0
  %992 = vmatpush2.msra.mxu0 0.0
  %993 = vmatprep.subr.mxu0 0.0
  %994 = vmatpush2.msra.mxu0 0.0
  %995 = vmatprep.subr.mxu0 0.0
  %996 = vmatpush2.msra.mxu0 0.0
  %997 = vmatprep.mubr.f32.mxu0 0.0
  %998 = vmatmul.mubr.f32.gmra.mxu0 %v931
  %v999 = vpop.f32.mrf.mxu0
  %v1000 = vadd.f32 0.0, %v999
  %v1001 = vpop.f32.mrf.mxu0
  %v1002 = vadd.f32 0.0, %v1001
  %1003 = vdwg.mxu0
  %1004 = vmatprep.subr.mxu0 0.0
  %1005 = vmatpush1.msra.mxu0 0.0
  %1006 = vmatprep.subr.mxu0 0.0
  %1007 = vmatpush1.msra.mxu0 0.0
  %1008 = vmatprep.subr.mxu0 0.0
  %1009 = vmatpush1.msra.mxu0 0.0
  %1010 = vmatprep.subr.mxu0 0.0
  %1011 = vmatpush1.msra.mxu0 0.0
  %1012 = vmatprep.subr.mxu0 0.0
  %1013 = vmatpush1.msra.mxu0 0.0
  %1014 = vmatprep.subr.mxu0 0.0
  %1015 = vmatpush1.msra.mxu0 0.0
  %1016 = vmatprep.subr.mxu0 0.0
  %1017 = vmatpush1.msra.mxu0 0.0
  %1018 = vmatprep.subr.mxu0 0.0
  %1019 = vmatpush1.msra.mxu0 0.0
  %1020 = vmatprep.subr.mxu0 0.0
  %1021 = vmatpush1.msra.mxu0 0.0
  %1022 = vmatprep.subr.mxu0 0.0
  %1023 = vmatpush1.msra.mxu0 0.0
  %1024 = vmatprep.subr.mxu0 0.0
  %1025 = vmatpush1.msra.mxu0 0.0
  %1026 = vmatprep.subr.mxu0 0.0
  %1027 = vmatpush1.msra.mxu0 0.0
  %1028 = vmatprep.subr.mxu0 %v135
  %1029 = vmatpush1.msra.mxu0 %v134
  %1030 = vmatprep.subr.mxu0 %v119
  %1031 = vmatpush1.msra.mxu0 %v118
  %1032 = vmatprep.subr.mxu0 %v103
  %1033 = vmatpush1.msra.mxu0 %v102
  %1034 = vmatprep.subr.mxu0 %v87
  %1035 = vmatpush1.msra.mxu0 %v86
  %1036 = vmatprep.subr.mxu0 0.0
  %1037 = vmatpush2.msra.mxu0 0.0
  %1038 = vmatprep.subr.mxu0 0.0
  %1039 = vmatpush2.msra.mxu0 0.0
  %1040 = vmatprep.subr.mxu0 0.0
  %1041 = vmatpush2.msra.mxu0 0.0
  %1042 = vmatprep.subr.mxu0 0.0
  %1043 = vmatpush2.msra.mxu0 0.0
  %1044 = vmatprep.subr.mxu0 0.0
  %1045 = vmatpush2.msra.mxu0 0.0
  %1046 = vmatprep.subr.mxu0 0.0
  %1047 = vmatpush2.msra.mxu0 0.0
  %1048 = vmatprep.subr.mxu0 0.0
  %1049 = vmatpush2.msra.mxu0 0.0
  %1050 = vmatprep.subr.mxu0 0.0
  %1051 = vmatpush2.msra.mxu0 0.0
  %1052 = vmatprep.subr.mxu0 0.0
  %1053 = vmatpush2.msra.mxu0 0.0
  %1054 = vmatprep.subr.mxu0 0.0
  %1055 = vmatpush2.msra.mxu0 0.0
  %1056 = vmatprep.subr.mxu0 0.0
  %1057 = vmatpush2.msra.mxu0 0.0
  %1058 = vmatprep.subr.mxu0 0.0
  %1059 = vmatpush2.msra.mxu0 0.0
  %1060 = vmatprep.subr.mxu0 0.0
  %1061 = vmatpush2.msra.mxu0 0.0
  %1062 = vmatprep.subr.mxu0 0.0
  %1063 = vmatpush2.msra.mxu0 0.0
  %1064 = vmatprep.subr.mxu0 0.0
  %1065 = vmatpush2.msra.mxu0 0.0
  %1066 = vmatprep.subr.mxu0 0.0
  %1067 = vmatpush2.msra.mxu0 0.0
  %1068 = vmatprep.mubr.f32.mxu0 0.0
  %1069 = vmatmul.mubr.f32.gmra.mxu0 %v931
  %v1070 = vpop.f32.mrf.mxu0
  %v1071 = vadd.f32 0.0, %v1070
  %v1072 = vpop.f32.mrf.mxu0
  %v1073 = vadd.f32 0.0, %v1072
  %1074 = vdwg.mxu0
  %1075 = vmatprep.subr.mxu0 0.0
  %1076 = vmatpush1.msra.mxu0 0.0
  %1077 = vmatprep.subr.mxu0 0.0
  %1078 = vmatpush1.msra.mxu0 0.0
  %1079 = vmatprep.subr.mxu0 0.0
  %1080 = vmatpush1.msra.mxu0 0.0
  %1081 = vmatprep.subr.mxu0 0.0
  %1082 = vmatpush1.msra.mxu0 0.0
  %1083 = vmatprep.subr.mxu0 0.0
  %1084 = vmatpush1.msra.mxu0 0.0
  %1085 = vmatprep.subr.mxu0 0.0
  %1086 = vmatpush1.msra.mxu0 0.0
  %1087 = vmatprep.subr.mxu0 0.0
  %1088 = vmatpush1.msra.mxu0 0.0
  %1089 = vmatprep.subr.mxu0 0.0
  %1090 = vmatpush1.msra.mxu0 0.0
  %1091 = vmatprep.subr.mxu0 0.0
  %1092 = vmatpush1.msra.mxu0 0.0
  %1093 = vmatprep.subr.mxu0 0.0
  %1094 = vmatpush1.msra.mxu0 0.0
  %1095 = vmatprep.subr.mxu0 0.0
  %1096 = vmatpush1.msra.mxu0 0.0
  %1097 = vmatprep.subr.mxu0 0.0
  %1098 = vmatpush1.msra.mxu0 0.0
  %1099 = vmatprep.subr.mxu0 %v137
  %1100 = vmatpush1.msra.mxu0 %v136
  %1101 = vmatprep.subr.mxu0 %v121
  %1102 = vmatpush1.msra.mxu0 %v120
  %1103 = vmatprep.subr.mxu0 %v105
  %1104 = vmatpush1.msra.mxu0 %v104
  %1105 = vmatprep.subr.mxu0 %v89
  %1106 = vmatpush1.msra.mxu0 %v88
  %1107 = vmatprep.subr.mxu0 0.0
  %1108 = vmatpush2.msra.mxu0 0.0
  %1109 = vmatprep.subr.mxu0 0.0
  %1110 = vmatpush2.msra.mxu0 0.0
  %1111 = vmatprep.subr.mxu0 0.0
  %1112 = vmatpush2.msra.mxu0 0.0
  %1113 = vmatprep.subr.mxu0 0.0
  %1114 = vmatpush2.msra.mxu0 0.0
  %1115 = vmatprep.subr.mxu0 0.0
  %1116 = vmatpush2.msra.mxu0 0.0
  %1117 = vmatprep.subr.mxu0 0.0
  %1118 = vmatpush2.msra.mxu0 0.0
  %1119 = vmatprep.subr.mxu0 0.0
  %1120 = vmatpush2.msra.mxu0 0.0
  %1121 = vmatprep.subr.mxu0 0.0
  %1122 = vmatpush2.msra.mxu0 0.0
  %1123 = vmatprep.subr.mxu0 0.0
  %1124 = vmatpush2.msra.mxu0 0.0
  %1125 = vmatprep.subr.mxu0 0.0
  %1126 = vmatpush2.msra.mxu0 0.0
  %1127 = vmatprep.subr.mxu0 0.0
  %1128 = vmatpush2.msra.mxu0 0.0
  %1129 = vmatprep.subr.mxu0 0.0
  %1130 = vmatpush2.msra.mxu0 0.0
  %1131 = vmatprep.subr.mxu0 0.0
  %1132 = vmatpush2.msra.mxu0 0.0
  %1133 = vmatprep.subr.mxu0 0.0
  %1134 = vmatpush2.msra.mxu0 0.0
  %1135 = vmatprep.subr.mxu0 0.0
  %1136 = vmatpush2.msra.mxu0 0.0
  %1137 = vmatprep.subr.mxu0 0.0
  %1138 = vmatpush2.msra.mxu0 0.0
  %1139 = vmatprep.mubr.f32.mxu0 0.0
  %1140 = vmatmul.mubr.f32.gmra.mxu0 %v931
  %v1141 = vpop.f32.mrf.mxu0
  %v1142 = vadd.f32 0.0, %v1141
  %v1143 = vpop.f32.mrf.mxu0
  %v1144 = vadd.f32 0.0, %v1143
  %1145 = vdwg.mxu0
  %1146 = vmatprep.subr.mxu0 0.0
  %1147 = vmatpush1.msra.mxu0 0.0
  %1148 = vmatprep.subr.mxu0 0.0
  %1149 = vmatpush1.msra.mxu0 0.0
  %1150 = vmatprep.subr.mxu0 0.0
  %1151 = vmatpush1.msra.mxu0 0.0
  %1152 = vmatprep.subr.mxu0 0.0
  %1153 = vmatpush1.msra.mxu0 0.0
  %1154 = vmatprep.subr.mxu0 0.0
  %1155 = vmatpush1.msra.mxu0 0.0
  %1156 = vmatprep.subr.mxu0 0.0
  %1157 = vmatpush1.msra.mxu0 0.0
  %1158 = vmatprep.subr.mxu0 0.0
  %1159 = vmatpush1.msra.mxu0 0.0
  %1160 = vmatprep.subr.mxu0 0.0
  %1161 = vmatpush1.msra.mxu0 0.0
  %1162 = vmatprep.subr.mxu0 0.0
  %1163 = vmatpush1.msra.mxu0 0.0
  %1164 = vmatprep.subr.mxu0 0.0
  %1165 = vmatpush1.msra.mxu0 0.0
  %1166 = vmatprep.subr.mxu0 0.0
  %1167 = vmatpush1.msra.mxu0 0.0
  %1168 = vmatprep.subr.mxu0 0.0
  %1169 = vmatpush1.msra.mxu0 0.0
  %1170 = vmatprep.subr.mxu0 %v139
  %1171 = vmatpush1.msra.mxu0 %v138
  %1172 = vmatprep.subr.mxu0 %v123
  %1173 = vmatpush1.msra.mxu0 %v122
  %1174 = vmatprep.subr.mxu0 %v107
  %1175 = vmatpush1.msra.mxu0 %v106
  %1176 = vmatprep.subr.mxu0 %v91
  %1177 = vmatpush1.msra.mxu0 %v90
  %1178 = vmatprep.subr.mxu0 0.0
  %1179 = vmatpush2.msra.mxu0 0.0
  %1180 = vmatprep.subr.mxu0 0.0
  %1181 = vmatpush2.msra.mxu0 0.0
  %1182 = vmatprep.subr.mxu0 0.0
  %1183 = vmatpush2.msra.mxu0 0.0
  %1184 = vmatprep.subr.mxu0 0.0
  %1185 = vmatpush2.msra.mxu0 0.0
  %1186 = vmatprep.subr.mxu0 0.0
  %1187 = vmatpush2.msra.mxu0 0.0
  %1188 = vmatprep.subr.mxu0 0.0
  %1189 = vmatpush2.msra.mxu0 0.0
  %1190 = vmatprep.subr.mxu0 0.0
  %1191 = vmatpush2.msra.mxu0 0.0
  %1192 = vmatprep.subr.mxu0 0.0
  %1193 = vmatpush2.msra.mxu0 0.0
  %1194 = vmatprep.subr.mxu0 0.0
  %1195 = vmatpush2.msra.mxu0 0.0
  %1196 = vmatprep.subr.mxu0 0.0
  %1197 = vmatpush2.msra.mxu0 0.0
  %1198 = vmatprep.subr.mxu0 0.0
  %1199 = vmatpush2.msra.mxu0 0.0
  %1200 = vmatprep.subr.mxu0 0.0
  %1201 = vmatpush2.msra.mxu0 0.0
  %1202 = vmatprep.subr.mxu0 0.0
  %1203 = vmatpush2.msra.mxu0 0.0
  %1204 = vmatprep.subr.mxu0 0.0
  %1205 = vmatpush2.msra.mxu0 0.0
  %1206 = vmatprep.subr.mxu0 0.0
  %1207 = vmatpush2.msra.mxu0 0.0
  %1208 = vmatprep.subr.mxu0 0.0
  %1209 = vmatpush2.msra.mxu0 0.0
  %1210 = vmatprep.mubr.f32.mxu0 0.0
  %1211 = vmatmul.mubr.f32.gmra.mxu0 %v931
  %v1212 = vpop.f32.mrf.mxu0
  %v1213 = vadd.f32 0.0, %v1212
  %v1214 = vpop.f32.mrf.mxu0
  %v1215 = vadd.f32 0.0, %v1214
  %1216 = vdwg.mxu0
  %1217 = vmatprep.subr.mxu0 0.0
  %1218 = vmatpush1.msra.mxu0 0.0
  %1219 = vmatprep.subr.mxu0 0.0
  %1220 = vmatpush1.msra.mxu0 0.0
  %1221 = vmatprep.subr.mxu0 0.0
  %1222 = vmatpush1.msra.mxu0 0.0
  %1223 = vmatprep.subr.mxu0 0.0
  %1224 = vmatpush1.msra.mxu0 0.0
  %1225 = vmatprep.subr.mxu0 0.0
  %1226 = vmatpush1.msra.mxu0 0.0
  %1227 = vmatprep.subr.mxu0 0.0
  %1228 = vmatpush1.msra.mxu0 0.0
  %1229 = vmatprep.subr.mxu0 0.0
  %1230 = vmatpush1.msra.mxu0 0.0
  %1231 = vmatprep.subr.mxu0 0.0
  %1232 = vmatpush1.msra.mxu0 0.0
  %1233 = vmatprep.subr.mxu0 0.0
  %1234 = vmatpush1.msra.mxu0 0.0
  %1235 = vmatprep.subr.mxu0 0.0
  %1236 = vmatpush1.msra.mxu0 0.0
  %1237 = vmatprep.subr.mxu0 0.0
  %1238 = vmatpush1.msra.mxu0 0.0
  %1239 = vmatprep.subr.mxu0 0.0
  %1240 = vmatpush1.msra.mxu0 0.0
  %1241 = vmatprep.subr.mxu0 %v141
  %1242 = vmatpush1.msra.mxu0 %v140
  %1243 = vmatprep.subr.mxu0 %v125
  %1244 = vmatpush1.msra.mxu0 %v124
  %1245 = vmatprep.subr.mxu0 %v109
  %1246 = vmatpush1.msra.mxu0 %v108
  %1247 = vmatprep.subr.mxu0 %v93
  %1248 = vmatpush1.msra.mxu0 %v92
  %1249 = vmatprep.subr.mxu0 0.0
  %1250 = vmatpush2.msra.mxu0 0.0
  %1251 = vmatprep.subr.mxu0 0.0
  %1252 = vmatpush2.msra.mxu0 0.0
  %1253 = vmatprep.subr.mxu0 0.0
  %1254 = vmatpush2.msra.mxu0 0.0
  %1255 = vmatprep.subr.mxu0 0.0
  %1256 = vmatpush2.msra.mxu0 0.0
  %1257 = vmatprep.subr.mxu0 0.0
  %1258 = vmatpush2.msra.mxu0 0.0
  %1259 = vmatprep.subr.mxu0 0.0
  %1260 = vmatpush2.msra.mxu0 0.0
  %1261 = vmatprep.subr.mxu0 0.0
  %1262 = vmatpush2.msra.mxu0 0.0
  %1263 = vmatprep.subr.mxu0 0.0
  %1264 = vmatpush2.msra.mxu0 0.0
  %1265 = vmatprep.subr.mxu0 0.0
  %1266 = vmatpush2.msra.mxu0 0.0
  %1267 = vmatprep.subr.mxu0 0.0
  %1268 = vmatpush2.msra.mxu0 0.0
  %1269 = vmatprep.subr.mxu0 0.0
  %1270 = vmatpush2.msra.mxu0 0.0
  %1271 = vmatprep.subr.mxu0 0.0
  %1272 = vmatpush2.msra.mxu0 0.0
  %1273 = vmatprep.subr.mxu0 0.0
  %1274 = vmatpush2.msra.mxu0 0.0
  %1275 = vmatprep.subr.mxu0 0.0
  %1276 = vmatpush2.msra.mxu0 0.0
  %1277 = vmatprep.subr.mxu0 0.0
  %1278 = vmatpush2.msra.mxu0 0.0
  %1279 = vmatprep.subr.mxu0 0.0
  %1280 = vmatpush2.msra.mxu0 0.0
  %1281 = vmatprep.mubr.f32.mxu0 0.0
  %1282 = vmatmul.mubr.f32.gmra.mxu0 %v931
  %v1283 = vpop.f32.mrf.mxu0
  %v1284 = vadd.f32 0.0, %v1283
  %v1285 = vpop.f32.mrf.mxu0
  %v1286 = vadd.f32 0.0, %v1285
  %1287 = vdwg.mxu0
  %1288 = vmatprep.subr.mxu0 0.0
  %1289 = vmatpush1.msra.mxu0 0.0
  %1290 = vmatprep.subr.mxu0 0.0
  %1291 = vmatpush1.msra.mxu0 0.0
  %1292 = vmatprep.subr.mxu0 0.0
  %1293 = vmatpush1.msra.mxu0 0.0
  %1294 = vmatprep.subr.mxu0 0.0
  %1295 = vmatpush1.msra.mxu0 0.0
  %1296 = vmatprep.subr.mxu0 0.0
  %1297 = vmatpush1.msra.mxu0 0.0
  %1298 = vmatprep.subr.mxu0 0.0
  %1299 = vmatpush1.msra.mxu0 0.0
  %1300 = vmatprep.subr.mxu0 0.0
  %1301 = vmatpush1.msra.mxu0 0.0
  %1302 = vmatprep.subr.mxu0 0.0
  %1303 = vmatpush1.msra.mxu0 0.0
  %1304 = vmatprep.subr.mxu0 0.0
  %1305 = vmatpush1.msra.mxu0 0.0
  %1306 = vmatprep.subr.mxu0 0.0
  %1307 = vmatpush1.msra.mxu0 0.0
  %1308 = vmatprep.subr.mxu0 0.0
  %1309 = vmatpush1.msra.mxu0 0.0
  %1310 = vmatprep.subr.mxu0 0.0
  %1311 = vmatpush1.msra.mxu0 0.0
  %1312 = vmatprep.subr.mxu0 %v143
  %1313 = vmatpush1.msra.mxu0 %v142
  %1314 = vmatprep.subr.mxu0 %v127
  %1315 = vmatpush1.msra.mxu0 %v126
  %1316 = vmatprep.subr.mxu0 %v111
  %1317 = vmatpush1.msra.mxu0 %v110
  %1318 = vmatprep.subr.mxu0 %v95
  %1319 = vmatpush1.msra.mxu0 %v94
  %1320 = vmatprep.subr.mxu0 0.0
  %1321 = vmatpush2.msra.mxu0 0.0
  %1322 = vmatprep.subr.mxu0 0.0
  %1323 = vmatpush2.msra.mxu0 0.0
  %1324 = vmatprep.subr.mxu0 0.0
  %1325 = vmatpush2.msra.mxu0 0.0
  %1326 = vmatprep.subr.mxu0 0.0
  %1327 = vmatpush2.msra.mxu0 0.0
  %1328 = vmatprep.subr.mxu0 0.0
  %1329 = vmatpush2.msra.mxu0 0.0
  %1330 = vmatprep.subr.mxu0 0.0
  %1331 = vmatpush2.msra.mxu0 0.0
  %1332 = vmatprep.subr.mxu0 0.0
  %1333 = vmatpush2.msra.mxu0 0.0
  %1334 = vmatprep.subr.mxu0 0.0
  %1335 = vmatpush2.msra.mxu0 0.0
  %1336 = vmatprep.subr.mxu0 0.0
  %1337 = vmatpush2.msra.mxu0 0.0
  %1338 = vmatprep.subr.mxu0 0.0
  %1339 = vmatpush2.msra.mxu0 0.0
  %1340 = vmatprep.subr.mxu0 0.0
  %1341 = vmatpush2.msra.mxu0 0.0
  %1342 = vmatprep.subr.mxu0 0.0
  %1343 = vmatpush2.msra.mxu0 0.0
  %1344 = vmatprep.subr.mxu0 0.0
  %1345 = vmatpush2.msra.mxu0 0.0
  %1346 = vmatprep.subr.mxu0 0.0
  %1347 = vmatpush2.msra.mxu0 0.0
  %1348 = vmatprep.subr.mxu0 0.0
  %1349 = vmatpush2.msra.mxu0 0.0
  %1350 = vmatprep.subr.mxu0 0.0
  %1351 = vmatpush2.msra.mxu0 0.0
  %1352 = vmatprep.mubr.f32.mxu0 0.0
  %1353 = vmatmul.mubr.f32.gmra.mxu0 %v931
  %v1354 = vpop.f32.mrf.mxu0
  %v1355 = vadd.f32 0.0, %v1354
  %v1356 = vpop.f32.mrf.mxu0
  %v1357 = vadd.f32 0.0, %v1356
  %1358 = vdwg.mxu0
  %1359 = vmatprep.subr.mxu0 0.0
  %1360 = vmatpush1.msra.mxu0 0.0
  %1361 = vmatprep.subr.mxu0 0.0
  %1362 = vmatpush1.msra.mxu0 0.0
  %1363 = vmatprep.subr.mxu0 0.0
  %1364 = vmatpush1.msra.mxu0 0.0
  %1365 = vmatprep.subr.mxu0 0.0
  %1366 = vmatpush1.msra.mxu0 0.0
  %1367 = vmatprep.subr.mxu0 0.0
  %1368 = vmatpush1.msra.mxu0 0.0
  %1369 = vmatprep.subr.mxu0 0.0
  %1370 = vmatpush1.msra.mxu0 0.0
  %1371 = vmatprep.subr.mxu0 0.0
  %1372 = vmatpush1.msra.mxu0 0.0
  %1373 = vmatprep.subr.mxu0 0.0
  %1374 = vmatpush1.msra.mxu0 0.0
  %1375 = vmatprep.subr.mxu0 0.0
  %1376 = vmatpush1.msra.mxu0 0.0
  %1377 = vmatprep.subr.mxu0 0.0
  %1378 = vmatpush1.msra.mxu0 0.0
  %1379 = vmatprep.subr.mxu0 0.0
  %1380 = vmatpush1.msra.mxu0 0.0
  %1381 = vmatprep.subr.mxu0 0.0
  %1382 = vmatpush1.msra.mxu0 0.0
  %1383 = vmatprep.subr.mxu0 %v145
  %1384 = vmatpush1.msra.mxu0 %v144
  %1385 = vmatprep.subr.mxu0 %v129
  %1386 = vmatpush1.msra.mxu0 %v128
  %1387 = vmatprep.subr.mxu0 %v113
  %1388 = vmatpush1.msra.mxu0 %v112
  %1389 = vmatprep.subr.mxu0 %v97
  %1390 = vmatpush1.msra.mxu0 %v96
  %1391 = vmatprep.subr.mxu0 0.0
  %1392 = vmatpush2.msra.mxu0 0.0
  %1393 = vmatprep.subr.mxu0 0.0
  %1394 = vmatpush2.msra.mxu0 0.0
  %1395 = vmatprep.subr.mxu0 0.0
  %1396 = vmatpush2.msra.mxu0 0.0
  %1397 = vmatprep.subr.mxu0 0.0
  %1398 = vmatpush2.msra.mxu0 0.0
  %1399 = vmatprep.subr.mxu0 0.0
  %1400 = vmatpush2.msra.mxu0 0.0
  %1401 = vmatprep.subr.mxu0 0.0
  %1402 = vmatpush2.msra.mxu0 0.0
  %1403 = vmatprep.subr.mxu0 0.0
  %1404 = vmatpush2.msra.mxu0 0.0
  %1405 = vmatprep.subr.mxu0 0.0
  %1406 = vmatpush2.msra.mxu0 0.0
  %1407 = vmatprep.subr.mxu0 0.0
  %1408 = vmatpush2.msra.mxu0 0.0
  %1409 = vmatprep.subr.mxu0 0.0
  %1410 = vmatpush2.msra.mxu0 0.0
  %1411 = vmatprep.subr.mxu0 0.0
  %1412 = vmatpush2.msra.mxu0 0.0
  %1413 = vmatprep.subr.mxu0 0.0
  %1414 = vmatpush2.msra.mxu0 0.0
  %1415 = vmatprep.subr.mxu0 0.0
  %1416 = vmatpush2.msra.mxu0 0.0
  %1417 = vmatprep.subr.mxu0 0.0
  %1418 = vmatpush2.msra.mxu0 0.0
  %1419 = vmatprep.subr.mxu0 0.0
  %1420 = vmatpush2.msra.mxu0 0.0
  %1421 = vmatprep.subr.mxu0 0.0
  %1422 = vmatpush2.msra.mxu0 0.0
  %1423 = vmatprep.mubr.f32.mxu0 0.0
  %1424 = vmatmul.mubr.f32.gmra.mxu0 %v931
  %v1425 = vpop.f32.mrf.mxu0
  %v1426 = vadd.f32 0.0, %v1425
  %v1427 = vpop.f32.mrf.mxu0
  %v1428 = vadd.f32 0.0, %v1427
  %1429 = vdwg.mxu0
  %1430 = vmatprep.subr.mxu0 0.0
  %1431 = vmatpush1.msra.mxu0 0.0
  %1432 = vmatprep.subr.mxu0 0.0
  %1433 = vmatpush1.msra.mxu0 0.0
  %1434 = vmatprep.subr.mxu0 0.0
  %1435 = vmatpush1.msra.mxu0 0.0
  %1436 = vmatprep.subr.mxu0 0.0
  %1437 = vmatpush1.msra.mxu0 0.0
  %1438 = vmatprep.subr.mxu0 0.0
  %1439 = vmatpush1.msra.mxu0 0.0
  %1440 = vmatprep.subr.mxu0 0.0
  %1441 = vmatpush1.msra.mxu0 0.0
  %1442 = vmatprep.subr.mxu0 0.0
  %1443 = vmatpush1.msra.mxu0 0.0
  %1444 = vmatprep.subr.mxu0 0.0
  %1445 = vmatpush1.msra.mxu0 0.0
  %1446 = vmatprep.subr.mxu0 0.0
  %1447 = vmatpush1.msra.mxu0 0.0
  %1448 = vmatprep.subr.mxu0 0.0
  %1449 = vmatpush1.msra.mxu0 0.0
  %1450 = vmatprep.subr.mxu0 0.0
  %1451 = vmatpush1.msra.mxu0 0.0
  %1452 = vmatprep.subr.mxu0 0.0
  %1453 = vmatpush1.msra.mxu0 0.0
  %1454 = vmatprep.subr.mxu0 %v147
  %1455 = vmatpush1.msra.mxu0 %v146
  %1456 = vmatprep.subr.mxu0 %v131
  %1457 = vmatpush1.msra.mxu0 %v130
  %1458 = vmatprep.subr.mxu0 %v115
  %1459 = vmatpush1.msra.mxu0 %v114
  %1460 = vmatprep.subr.mxu0 %v99
  %1461 = vmatpush1.msra.mxu0 %v98
  %1462 = vmatprep.subr.mxu0 0.0
  %1463 = vmatpush2.msra.mxu0 0.0
  %1464 = vmatprep.subr.mxu0 0.0
  %1465 = vmatpush2.msra.mxu0 0.0
  %1466 = vmatprep.subr.mxu0 0.0
  %1467 = vmatpush2.msra.mxu0 0.0
  %1468 = vmatprep.subr.mxu0 0.0
  %1469 = vmatpush2.msra.mxu0 0.0
  %1470 = vmatprep.subr.mxu0 0.0
  %1471 = vmatpush2.msra.mxu0 0.0
  %1472 = vmatprep.subr.mxu0 0.0
  %1473 = vmatpush2.msra.mxu0 0.0
  %1474 = vmatprep.subr.mxu0 0.0
  %1475 = vmatpush2.msra.mxu0 0.0
  %1476 = vmatprep.subr.mxu0 0.0
  %1477 = vmatpush2.msra.mxu0 0.0
  %1478 = vmatprep.subr.mxu0 0.0
  %1479 = vmatpush2.msra.mxu0 0.0
  %1480 = vmatprep.subr.mxu0 0.0
  %1481 = vmatpush2.msra.mxu0 0.0
  %1482 = vmatprep.subr.mxu0 0.0
  %1483 = vmatpush2.msra.mxu0 0.0
  %1484 = vmatprep.subr.mxu0 0.0
  %1485 = vmatpush2.msra.mxu0 0.0
  %1486 = vmatprep.subr.mxu0 0.0
  %1487 = vmatpush2.msra.mxu0 0.0
  %1488 = vmatprep.subr.mxu0 0.0
  %1489 = vmatpush2.msra.mxu0 0.0
  %1490 = vmatprep.subr.mxu0 0.0
  %1491 = vmatpush2.msra.mxu0 0.0
  %1492 = vmatprep.subr.mxu0 0.0
  %1493 = vmatpush2.msra.mxu0 0.0
  %1494 = vmatprep.mubr.f32.mxu0 0.0
  %1495 = vmatmul.mubr.f32.gmra.mxu0 %v931
  %v1496 = vpop.f32.mrf.mxu0
  %v1497 = vadd.f32 0.0, %v1496
  %v1498 = vpop.f32.mrf.mxu0
  %v1499 = vadd.f32 0.0, %v1498
  %1500 = vdwg.mxu0
  %v1501 = vmul.f32 %v1000, %v324
  %v1502 = vmul.f32 %v1002, %v325
  %v1503 = vmul.f32 %v1071, %v326
  %v1504 = vmul.f32 %v1073, %v327
  %v1505 = vmul.f32 %v1142, %v328
  %v1506 = vmul.f32 %v1144, %v329
  %v1507 = vmul.f32 %v1213, %v330
  %v1508 = vmul.f32 %v1215, %v331
  %v1509 = vmul.f32 %v1284, %v332
  %v1510 = vmul.f32 %v1286, %v333
  %v1511 = vmul.f32 %v1355, %v334
  %v1512 = vmul.f32 %v1357, %v335
  %v1513 = vmul.f32 %v1426, %v336
  %v1514 = vmul.f32 %v1428, %v337
  %v1515 = vmul.f32 %v1497, %v338
  %v1516 = vmul.f32 %v1499, %v339
  %v1517 = vadd.f32 %v914, %v1501
  %v1518 = vadd.f32 %v915, %v1502
  %v1519 = vadd.f32 %v916, %v1503
  %v1520 = vadd.f32 %v917, %v1504
  %v1521 = vadd.f32 %v918, %v1505
  %v1522 = vadd.f32 %v919, %v1506
  %v1523 = vadd.f32 %v920, %v1507
  %v1524 = vadd.f32 %v921, %v1508
  %v1525 = vadd.f32 %v922, %v1509
  %v1526 = vadd.f32 %v923, %v1510
  %v1527 = vadd.f32 %v924, %v1511
  %v1528 = vadd.f32 %v925, %v1512
  %v1529 = vadd.f32 %v926, %v1513
  %v1530 = vadd.f32 %v927, %v1514
  %v1531 = vadd.f32 %v928, %v1515
  %v1532 = vadd.f32 %v929, %v1516
  %v1533 = vld [vmem:[%s3] sm:$0xff]
  %v1534 = vld [vmem:[%s3 + $0x8] sm:$0xff]
  %vm1535 = vcmp.ne.s32.totalorder %v1533, 255
  %vm1536 = vcmp.ne.s32.totalorder %v1534, 255
  %v1537 = vsel %vm1535, 1, 0
  %v1538 = vsel %vm1536, 1, 0
  %v1539 = vcvt.s32.f32 %v1537
  %v1540 = vcvt.s32.f32 %v1538
  %v1541 = vlaneseq
  %v1542 = vshrl.u32 %v1541, 7
  %v1543 = vlaneseq
  %v1544 = vshrl.u32 %v1543, 7
  %v1545 = vsub.s32 0, %v1544
  %v1546 = vrot.slane %v1533, %v1545
  %v1547 = vlaneseq
  %v1548 = vshrl.u32 %v1547, 7
  %v1549 = vsub.s32 1, %v1548
  %v1550 = vrot.slane %v1533, %v1549
  %v1551 = vlaneseq
  %v1552 = vshrl.u32 %v1551, 7
  %v1553 = vsub.s32 2, %v1552
  %v1554 = vrot.slane %v1533, %v1553
  %v1555 = vlaneseq
  %v1556 = vshrl.u32 %v1555, 7
  %v1557 = vsub.s32 3, %v1556
  %v1558 = vrot.slane %v1533, %v1557
  %v1559 = vlaneseq
  %v1560 = vshrl.u32 %v1559, 7
  %v1561 = vsub.s32 4, %v1560
  %v1562 = vrot.slane %v1533, %v1561
  %v1563 = vlaneseq
  %v1564 = vshrl.u32 %v1563, 7
  %v1565 = vsub.s32 5, %v1564
  %v1566 = vrot.slane %v1533, %v1565
  %v1567 = vlaneseq
  %v1568 = vshrl.u32 %v1567, 7
  %v1569 = vsub.s32 6, %v1568
  %v1570 = vrot.slane %v1533, %v1569
  %v1571 = vlaneseq
  %v1572 = vshrl.u32 %v1571, 7
  %v1573 = vsub.s32 7, %v1572
  %v1574 = vrot.slane %v1533, %v1573
  %v1575 = vlaneseq
  %v1576 = vshrl.u32 %v1575, 7
  %v1577 = vsub.s32 0, %v1576
  %v1578 = vrot.slane %v1534, %v1577
  %v1579 = vlaneseq
  %v1580 = vshrl.u32 %v1579, 7
  %v1581 = vsub.s32 1, %v1580
  %v1582 = vrot.slane %v1534, %v1581
  %v1583 = vlaneseq
  %v1584 = vshrl.u32 %v1583, 7
  %v1585 = vsub.s32 2, %v1584
  %v1586 = vrot.slane %v1534, %v1585
  %v1587 = vlaneseq
  %v1588 = vshrl.u32 %v1587, 7
  %v1589 = vsub.s32 3, %v1588
  %v1590 = vrot.slane %v1534, %v1589
  %v1591 = vlaneseq
  %v1592 = vshrl.u32 %v1591, 7
  %v1593 = vsub.s32 4, %v1592
  %v1594 = vrot.slane %v1534, %v1593
  %v1595 = vlaneseq
  %v1596 = vshrl.u32 %v1595, 7
  %v1597 = vsub.s32 5, %v1596
  %v1598 = vrot.slane %v1534, %v1597
  %v1599 = vlaneseq
  %v1600 = vshrl.u32 %v1599, 7
  %v1601 = vsub.s32 6, %v1600
  %v1602 = vrot.slane %v1534, %v1601
  %v1603 = vlaneseq
  %v1604 = vshrl.u32 %v1603, 7
  %v1605 = vsub.s32 7, %v1604
  %v1606 = vrot.slane %v1534, %v1605
  %vm1607 = vcmp.eq.s32.totalorder %v1542, %v1546
  %vm1608 = vcmp.eq.s32.totalorder %v1542, %v1550
  %vm1609 = vcmp.eq.s32.totalorder %v1542, %v1554
  %vm1610 = vcmp.eq.s32.totalorder %v1542, %v1558
  %vm1611 = vcmp.eq.s32.totalorder %v1542, %v1562
  %vm1612 = vcmp.eq.s32.totalorder %v1542, %v1566
  %vm1613 = vcmp.eq.s32.totalorder %v1542, %v1570
  %vm1614 = vcmp.eq.s32.totalorder %v1542, %v1574
  %vm1615 = vcmp.eq.s32.totalorder %v1542, %v1578
  %vm1616 = vcmp.eq.s32.totalorder %v1542, %v1582
  %vm1617 = vcmp.eq.s32.totalorder %v1542, %v1586
  %vm1618 = vcmp.eq.s32.totalorder %v1542, %v1590
  %vm1619 = vcmp.eq.s32.totalorder %v1542, %v1594
  %vm1620 = vcmp.eq.s32.totalorder %v1542, %v1598
  %vm1621 = vcmp.eq.s32.totalorder %v1542, %v1602
  %vm1622 = vcmp.eq.s32.totalorder %v1542, %v1606
  %v1623 = vsel %vm1607, 1, 0
  %v1624 = vsel %vm1608, 1, 0
  %v1625 = vsel %vm1609, 1, 0
  %v1626 = vsel %vm1610, 1, 0
  %v1627 = vsel %vm1611, 1, 0
  %v1628 = vsel %vm1612, 1, 0
  %v1629 = vsel %vm1613, 1, 0
  %v1630 = vsel %vm1614, 1, 0
  %v1631 = vsel %vm1615, 1, 0
  %v1632 = vsel %vm1616, 1, 0
  %v1633 = vsel %vm1617, 1, 0
  %v1634 = vsel %vm1618, 1, 0
  %v1635 = vsel %vm1619, 1, 0
  %v1636 = vsel %vm1620, 1, 0
  %v1637 = vsel %vm1621, 1, 0
  %v1638 = vsel %vm1622, 1, 0
  %v1639 = vcvt.s32.f32 %v1623
  %v1640 = vcvt.s32.f32 %v1624
  %v1641 = vcvt.s32.f32 %v1625
  %v1642 = vcvt.s32.f32 %v1626
  %v1643 = vcvt.s32.f32 %v1627
  %v1644 = vcvt.s32.f32 %v1628
  %v1645 = vcvt.s32.f32 %v1629
  %v1646 = vcvt.s32.f32 %v1630
  %v1647 = vcvt.s32.f32 %v1631
  %v1648 = vcvt.s32.f32 %v1632
  %v1649 = vcvt.s32.f32 %v1633
  %v1650 = vcvt.s32.f32 %v1634
  %v1651 = vcvt.s32.f32 %v1635
  %v1652 = vcvt.s32.f32 %v1636
  %v1653 = vcvt.s32.f32 %v1637
  %v1654 = vcvt.s32.f32 %v1638
  %v1655 = vrot.slane %v1517, 4
  %v1656 = vmax.f32 %v1517, %v1655
  %v1657 = vrot.slane %v1656, 2
  %v1658 = vmax.f32 %v1656, %v1657
  %v1659 = vrot.slane %v1658, 1
  %v1660 = vmax.f32 %v1658, %v1659
  %v1661 = vrot.slane %v1518, 4
  %v1662 = vmax.f32 %v1518, %v1661
  %v1663 = vrot.slane %v1662, 2
  %v1664 = vmax.f32 %v1662, %v1663
  %v1665 = vrot.slane %v1664, 1
  %v1666 = vmax.f32 %v1664, %v1665
  %v1667 = vrot.slane %v1519, 4
  %v1668 = vmax.f32 %v1519, %v1667
  %v1669 = vrot.slane %v1668, 2
  %v1670 = vmax.f32 %v1668, %v1669
  %v1671 = vrot.slane %v1670, 1
  %v1672 = vmax.f32 %v1670, %v1671
  %v1673 = vrot.slane %v1520, 4
  %v1674 = vmax.f32 %v1520, %v1673
  %v1675 = vrot.slane %v1674, 2
  %v1676 = vmax.f32 %v1674, %v1675
  %v1677 = vrot.slane %v1676, 1
  %v1678 = vmax.f32 %v1676, %v1677
  %v1679 = vrot.slane %v1521, 4
  %v1680 = vmax.f32 %v1521, %v1679
  %v1681 = vrot.slane %v1680, 2
  %v1682 = vmax.f32 %v1680, %v1681
  %v1683 = vrot.slane %v1682, 1
  %v1684 = vmax.f32 %v1682, %v1683
  %v1685 = vrot.slane %v1522, 4
  %v1686 = vmax.f32 %v1522, %v1685
  %v1687 = vrot.slane %v1686, 2
  %v1688 = vmax.f32 %v1686, %v1687
  %v1689 = vrot.slane %v1688, 1
  %v1690 = vmax.f32 %v1688, %v1689
  %v1691 = vrot.slane %v1523, 4
  %v1692 = vmax.f32 %v1523, %v1691
  %v1693 = vrot.slane %v1692, 2
  %v1694 = vmax.f32 %v1692, %v1693
  %v1695 = vrot.slane %v1694, 1
  %v1696 = vmax.f32 %v1694, %v1695
  %v1697 = vrot.slane %v1524, 4
  %v1698 = vmax.f32 %v1524, %v1697
  %v1699 = vrot.slane %v1698, 2
  %v1700 = vmax.f32 %v1698, %v1699
  %v1701 = vrot.slane %v1700, 1
  %v1702 = vmax.f32 %v1700, %v1701
  %v1703 = vrot.slane %v1525, 4
  %v1704 = vmax.f32 %v1525, %v1703
  %v1705 = vrot.slane %v1704, 2
  %v1706 = vmax.f32 %v1704, %v1705
  %v1707 = vrot.slane %v1706, 1
  %v1708 = vmax.f32 %v1706, %v1707
  %v1709 = vrot.slane %v1526, 4
  %v1710 = vmax.f32 %v1526, %v1709
  %v1711 = vrot.slane %v1710, 2
  %v1712 = vmax.f32 %v1710, %v1711
  %v1713 = vrot.slane %v1712, 1
  %v1714 = vmax.f32 %v1712, %v1713
  %v1715 = vrot.slane %v1527, 4
  %v1716 = vmax.f32 %v1527, %v1715
  %v1717 = vrot.slane %v1716, 2
  %v1718 = vmax.f32 %v1716, %v1717
  %v1719 = vrot.slane %v1718, 1
  %v1720 = vmax.f32 %v1718, %v1719
  %v1721 = vrot.slane %v1528, 4
  %v1722 = vmax.f32 %v1528, %v1721
  %v1723 = vrot.slane %v1722, 2
  %v1724 = vmax.f32 %v1722, %v1723
  %v1725 = vrot.slane %v1724, 1
  %v1726 = vmax.f32 %v1724, %v1725
  %v1727 = vrot.slane %v1529, 4
  %v1728 = vmax.f32 %v1529, %v1727
  %v1729 = vrot.slane %v1728, 2
  %v1730 = vmax.f32 %v1728, %v1729
  %v1731 = vrot.slane %v1730, 1
  %v1732 = vmax.f32 %v1730, %v1731
  %v1733 = vrot.slane %v1530, 4
  %v1734 = vmax.f32 %v1530, %v1733
  %v1735 = vrot.slane %v1734, 2
  %v1736 = vmax.f32 %v1734, %v1735
  %v1737 = vrot.slane %v1736, 1
  %v1738 = vmax.f32 %v1736, %v1737
  %v1739 = vrot.slane %v1531, 4
  %v1740 = vmax.f32 %v1531, %v1739
  %v1741 = vrot.slane %v1740, 2
  %v1742 = vmax.f32 %v1740, %v1741
  %v1743 = vrot.slane %v1742, 1
  %v1744 = vmax.f32 %v1742, %v1743
  %v1745 = vrot.slane %v1532, 4
  %v1746 = vmax.f32 %v1532, %v1745
  %v1747 = vrot.slane %v1746, 2
  %v1748 = vmax.f32 %v1746, %v1747
  %v1749 = vrot.slane %v1748, 1
  %v1750 = vmax.f32 %v1748, %v1749
  %v1751 = vsub.f32 %v1517, %v1660
  %v1752 = vsub.f32 %v1518, %v1666
  %v1753 = vsub.f32 %v1519, %v1672
  %v1754 = vsub.f32 %v1520, %v1678
  %v1755 = vsub.f32 %v1521, %v1684
  %v1756 = vsub.f32 %v1522, %v1690
  %v1757 = vsub.f32 %v1523, %v1696
  %v1758 = vsub.f32 %v1524, %v1702
  %v1759 = vsub.f32 %v1525, %v1708
  %v1760 = vsub.f32 %v1526, %v1714
  %v1761 = vsub.f32 %v1527, %v1720
  %v1762 = vsub.f32 %v1528, %v1726
  %v1763 = vsub.f32 %v1529, %v1732
  %v1764 = vsub.f32 %v1530, %v1738
  %v1765 = vsub.f32 %v1531, %v1744
  %v1766 = vsub.f32 %v1532, %v1750
  %v1767 = vmul.f32 %v1751, 1.442695
  %v1768 = vpow.pop %v1767
  %v1769 = vmul.f32 %v1752, 1.442695
  %v1770 = vpow.pop %v1769
  %v1771 = vmul.f32 %v1753, 1.442695
  %v1772 = vpow.pop %v1771
  %v1773 = vmul.f32 %v1754, 1.442695
  %v1774 = vpow.pop %v1773
  %v1775 = vmul.f32 %v1755, 1.442695
  %v1776 = vpow.pop %v1775
  %v1777 = vmul.f32 %v1756, 1.442695
  %v1778 = vpow.pop %v1777
  %v1779 = vmul.f32 %v1757, 1.442695
  %v1780 = vpow.pop %v1779
  %v1781 = vmul.f32 %v1758, 1.442695
  %v1782 = vpow.pop %v1781
  %v1783 = vmul.f32 %v1759, 1.442695
  %v1784 = vpow.pop %v1783
  %v1785 = vmul.f32 %v1760, 1.442695
  %v1786 = vpow.pop %v1785
  %v1787 = vmul.f32 %v1761, 1.442695
  %v1788 = vpow.pop %v1787
  %v1789 = vmul.f32 %v1762, 1.442695
  %v1790 = vpow.pop %v1789
  %v1791 = vmul.f32 %v1763, 1.442695
  %v1792 = vpow.pop %v1791
  %v1793 = vmul.f32 %v1764, 1.442695
  %v1794 = vpow.pop %v1793
  %v1795 = vmul.f32 %v1765, 1.442695
  %v1796 = vpow.pop %v1795
  %v1797 = vmul.f32 %v1766, 1.442695
  %v1798 = vpow.pop %v1797
  %v1799 = vrot.slane %v1768, 4
  %v1800 = vadd.f32 %v1768, %v1799
  %v1801 = vrot.slane %v1800, 2
  %v1802 = vadd.f32 %v1800, %v1801
  %v1803 = vrot.slane %v1802, 1
  %v1804 = vadd.f32 %v1802, %v1803
  %v1805 = vrot.slane %v1770, 4
  %v1806 = vadd.f32 %v1770, %v1805
  %v1807 = vrot.slane %v1806, 2
  %v1808 = vadd.f32 %v1806, %v1807
  %v1809 = vrot.slane %v1808, 1
  %v1810 = vadd.f32 %v1808, %v1809
  %v1811 = vrot.slane %v1772, 4
  %v1812 = vadd.f32 %v1772, %v1811
  %v1813 = vrot.slane %v1812, 2
  %v1814 = vadd.f32 %v1812, %v1813
  %v1815 = vrot.slane %v1814, 1
  %v1816 = vadd.f32 %v1814, %v1815
  %v1817 = vrot.slane %v1774, 4
  %v1818 = vadd.f32 %v1774, %v1817
  %v1819 = vrot.slane %v1818, 2
  %v1820 = vadd.f32 %v1818, %v1819
  %v1821 = vrot.slane %v1820, 1
  %v1822 = vadd.f32 %v1820, %v1821
  %v1823 = vrot.slane %v1776, 4
  %v1824 = vadd.f32 %v1776, %v1823
  %v1825 = vrot.slane %v1824, 2
  %v1826 = vadd.f32 %v1824, %v1825
  %v1827 = vrot.slane %v1826, 1
  %v1828 = vadd.f32 %v1826, %v1827
  %v1829 = vrot.slane %v1778, 4
  %v1830 = vadd.f32 %v1778, %v1829
  %v1831 = vrot.slane %v1830, 2
  %v1832 = vadd.f32 %v1830, %v1831
  %v1833 = vrot.slane %v1832, 1
  %v1834 = vadd.f32 %v1832, %v1833
  %v1835 = vrot.slane %v1780, 4
  %v1836 = vadd.f32 %v1780, %v1835
  %v1837 = vrot.slane %v1836, 2
  %v1838 = vadd.f32 %v1836, %v1837
  %v1839 = vrot.slane %v1838, 1
  %v1840 = vadd.f32 %v1838, %v1839
  %v1841 = vrot.slane %v1782, 4
  %v1842 = vadd.f32 %v1782, %v1841
  %v1843 = vrot.slane %v1842, 2
  %v1844 = vadd.f32 %v1842, %v1843
  %v1845 = vrot.slane %v1844, 1
  %v1846 = vadd.f32 %v1844, %v1845
  %v1847 = vrot.slane %v1784, 4
  %v1848 = vadd.f32 %v1784, %v1847
  %v1849 = vrot.slane %v1848, 2
  %v1850 = vadd.f32 %v1848, %v1849
  %v1851 = vrot.slane %v1850, 1
  %v1852 = vadd.f32 %v1850, %v1851
  %v1853 = vrot.slane %v1786, 4
  %v1854 = vadd.f32 %v1786, %v1853
  %v1855 = vrot.slane %v1854, 2
  %v1856 = vadd.f32 %v1854, %v1855
  %v1857 = vrot.slane %v1856, 1
  %v1858 = vadd.f32 %v1856, %v1857
  %v1859 = vrot.slane %v1788, 4
  %v1860 = vadd.f32 %v1788, %v1859
  %v1861 = vrot.slane %v1860, 2
  %v1862 = vadd.f32 %v1860, %v1861
  %v1863 = vrot.slane %v1862, 1
  %v1864 = vadd.f32 %v1862, %v1863
  %v1865 = vrot.slane %v1790, 4
  %v1866 = vadd.f32 %v1790, %v1865
  %v1867 = vrot.slane %v1866, 2
  %v1868 = vadd.f32 %v1866, %v1867
  %v1869 = vrot.slane %v1868, 1
  %v1870 = vadd.f32 %v1868, %v1869
  %v1871 = vrot.slane %v1792, 4
  %v1872 = vadd.f32 %v1792, %v1871
  %v1873 = vrot.slane %v1872, 2
  %v1874 = vadd.f32 %v1872, %v1873
  %v1875 = vrot.slane %v1874, 1
  %v1876 = vadd.f32 %v1874, %v1875
  %v1877 = vrot.slane %v1794, 4
  %v1878 = vadd.f32 %v1794, %v1877
  %v1879 = vrot.slane %v1878, 2
  %v1880 = vadd.f32 %v1878, %v1879
  %v1881 = vrot.slane %v1880, 1
  %v1882 = vadd.f32 %v1880, %v1881
  %v1883 = vrot.slane %v1796, 4
  %v1884 = vadd.f32 %v1796, %v1883
  %v1885 = vrot.slane %v1884, 2
  %v1886 = vadd.f32 %v1884, %v1885
  %v1887 = vrot.slane %v1886, 1
  %v1888 = vadd.f32 %v1886, %v1887
  %v1889 = vrot.slane %v1798, 4
  %v1890 = vadd.f32 %v1798, %v1889
  %v1891 = vrot.slane %v1890, 2
  %v1892 = vadd.f32 %v1890, %v1891
  %v1893 = vrot.slane %v1892, 1
  %v1894 = vadd.f32 %v1892, %v1893
  %v1895 = vlog2.pop %v1804
  %v1896 = vmul.f32 %v1895, 0.6931472
  %v1897 = vlog2.pop %v1810
  %v1898 = vmul.f32 %v1897, 0.6931472
  %v1899 = vlog2.pop %v1816
  %v1900 = vmul.f32 %v1899, 0.6931472
  %v1901 = vlog2.pop %v1822
  %v1902 = vmul.f32 %v1901, 0.6931472
  %v1903 = vlog2.pop %v1828
  %v1904 = vmul.f32 %v1903, 0.6931472
  %v1905 = vlog2.pop %v1834
  %v1906 = vmul.f32 %v1905, 0.6931472
  %v1907 = vlog2.pop %v1840
  %v1908 = vmul.f32 %v1907, 0.6931472
  %v1909 = vlog2.pop %v1846
  %v1910 = vmul.f32 %v1909, 0.6931472
  %v1911 = vlog2.pop %v1852
  %v1912 = vmul.f32 %v1911, 0.6931472
  %v1913 = vlog2.pop %v1858
  %v1914 = vmul.f32 %v1913, 0.6931472
  %v1915 = vlog2.pop %v1864
  %v1916 = vmul.f32 %v1915, 0.6931472
  %v1917 = vlog2.pop %v1870
  %v1918 = vmul.f32 %v1917, 0.6931472
  %v1919 = vlog2.pop %v1876
  %v1920 = vmul.f32 %v1919, 0.6931472
  %v1921 = vlog2.pop %v1882
  %v1922 = vmul.f32 %v1921, 0.6931472
  %v1923 = vlog2.pop %v1888
  %v1924 = vmul.f32 %v1923, 0.6931472
  %v1925 = vlog2.pop %v1894
  %v1926 = vmul.f32 %v1925, 0.6931472
  %v1927 = vadd.f32 %v1896, %v1660
  %v1928 = vadd.f32 %v1898, %v1666
  %v1929 = vadd.f32 %v1900, %v1672
  %v1930 = vadd.f32 %v1902, %v1678
  %v1931 = vadd.f32 %v1904, %v1684
  %v1932 = vadd.f32 %v1906, %v1690
  %v1933 = vadd.f32 %v1908, %v1696
  %v1934 = vadd.f32 %v1910, %v1702
  %v1935 = vadd.f32 %v1912, %v1708
  %v1936 = vadd.f32 %v1914, %v1714
  %v1937 = vadd.f32 %v1916, %v1720
  %v1938 = vadd.f32 %v1918, %v1726
  %v1939 = vadd.f32 %v1920, %v1732
  %v1940 = vadd.f32 %v1922, %v1738
  %v1941 = vadd.f32 %v1924, %v1744
  %v1942 = vadd.f32 %v1926, %v1750
  %v1943 = vmul.f32 %v1517, %v1639
  %v1944 = vmul.f32 %v1518, %v1640
  %v1945 = vmul.f32 %v1519, %v1641
  %v1946 = vmul.f32 %v1520, %v1642
  %v1947 = vmul.f32 %v1521, %v1643
  %v1948 = vmul.f32 %v1522, %v1644
  %v1949 = vmul.f32 %v1523, %v1645
  %v1950 = vmul.f32 %v1524, %v1646
  %v1951 = vmul.f32 %v1525, %v1647
  %v1952 = vmul.f32 %v1526, %v1648
  %v1953 = vmul.f32 %v1527, %v1649
  %v1954 = vmul.f32 %v1528, %v1650
  %v1955 = vmul.f32 %v1529, %v1651
  %v1956 = vmul.f32 %v1530, %v1652
  %v1957 = vmul.f32 %v1531, %v1653
  %v1958 = vmul.f32 %v1532, %v1654
  %v1959 = vrot.slane %v1943, 4
  %v1960 = vadd.f32 %v1943, %v1959
  %v1961 = vrot.slane %v1960, 2
  %v1962 = vadd.f32 %v1960, %v1961
  %v1963 = vrot.slane %v1962, 1
  %v1964 = vadd.f32 %v1962, %v1963
  %v1965 = vrot.slane %v1944, 4
  %v1966 = vadd.f32 %v1944, %v1965
  %v1967 = vrot.slane %v1966, 2
  %v1968 = vadd.f32 %v1966, %v1967
  %v1969 = vrot.slane %v1968, 1
  %v1970 = vadd.f32 %v1968, %v1969
  %v1971 = vrot.slane %v1945, 4
  %v1972 = vadd.f32 %v1945, %v1971
  %v1973 = vrot.slane %v1972, 2
  %v1974 = vadd.f32 %v1972, %v1973
  %v1975 = vrot.slane %v1974, 1
  %v1976 = vadd.f32 %v1974, %v1975
  %v1977 = vrot.slane %v1946, 4
  %v1978 = vadd.f32 %v1946, %v1977
  %v1979 = vrot.slane %v1978, 2
  %v1980 = vadd.f32 %v1978, %v1979
  %v1981 = vrot.slane %v1980, 1
  %v1982 = vadd.f32 %v1980, %v1981
  %v1983 = vrot.slane %v1947, 4
  %v1984 = vadd.f32 %v1947, %v1983
  %v1985 = vrot.slane %v1984, 2
  %v1986 = vadd.f32 %v1984, %v1985
  %v1987 = vrot.slane %v1986, 1
  %v1988 = vadd.f32 %v1986, %v1987
  %v1989 = vrot.slane %v1948, 4
  %v1990 = vadd.f32 %v1948, %v1989
  %v1991 = vrot.slane %v1990, 2
  %v1992 = vadd.f32 %v1990, %v1991
  %v1993 = vrot.slane %v1992, 1
  %v1994 = vadd.f32 %v1992, %v1993
  %v1995 = vrot.slane %v1949, 4
  %v1996 = vadd.f32 %v1949, %v1995
  %v1997 = vrot.slane %v1996, 2
  %v1998 = vadd.f32 %v1996, %v1997
  %v1999 = vrot.slane %v1998, 1
  %v2000 = vadd.f32 %v1998, %v1999
  %v2001 = vrot.slane %v1950, 4
  %v2002 = vadd.f32 %v1950, %v2001
  %v2003 = vrot.slane %v2002, 2
  %v2004 = vadd.f32 %v2002, %v2003
  %v2005 = vrot.slane %v2004, 1
  %v2006 = vadd.f32 %v2004, %v2005
  %v2007 = vrot.slane %v1951, 4
  %v2008 = vadd.f32 %v1951, %v2007
  %v2009 = vrot.slane %v2008, 2
  %v2010 = vadd.f32 %v2008, %v2009
  %v2011 = vrot.slane %v2010, 1
  %v2012 = vadd.f32 %v2010, %v2011
  %v2013 = vrot.slane %v1952, 4
  %v2014 = vadd.f32 %v1952, %v2013
  %v2015 = vrot.slane %v2014, 2
  %v2016 = vadd.f32 %v2014, %v2015
  %v2017 = vrot.slane %v2016, 1
  %v2018 = vadd.f32 %v2016, %v2017
  %v2019 = vrot.slane %v1953, 4
  %v2020 = vadd.f32 %v1953, %v2019
  %v2021 = vrot.slane %v2020, 2
  %v2022 = vadd.f32 %v2020, %v2021
  %v2023 = vrot.slane %v2022, 1
  %v2024 = vadd.f32 %v2022, %v2023
  %v2025 = vrot.slane %v1954, 4
  %v2026 = vadd.f32 %v1954, %v2025
  %v2027 = vrot.slane %v2026, 2
  %v2028 = vadd.f32 %v2026, %v2027
  %v2029 = vrot.slane %v2028, 1
  %v2030 = vadd.f32 %v2028, %v2029
  %v2031 = vrot.slane %v1955, 4
  %v2032 = vadd.f32 %v1955, %v2031
  %v2033 = vrot.slane %v2032, 2
  %v2034 = vadd.f32 %v2032, %v2033
  %v2035 = vrot.slane %v2034, 1
  %v2036 = vadd.f32 %v2034, %v2035
  %v2037 = vrot.slane %v1956, 4
  %v2038 = vadd.f32 %v1956, %v2037
  %v2039 = vrot.slane %v2038, 2
  %v2040 = vadd.f32 %v2038, %v2039
  %v2041 = vrot.slane %v2040, 1
  %v2042 = vadd.f32 %v2040, %v2041
  %v2043 = vrot.slane %v1957, 4
  %v2044 = vadd.f32 %v1957, %v2043
  %v2045 = vrot.slane %v2044, 2
  %v2046 = vadd.f32 %v2044, %v2045
  %v2047 = vrot.slane %v2046, 1
  %v2048 = vadd.f32 %v2046, %v2047
  %v2049 = vrot.slane %v1958, 4
  %v2050 = vadd.f32 %v1958, %v2049
  %v2051 = vrot.slane %v2050, 2
  %v2052 = vadd.f32 %v2050, %v2051
  %v2053 = vrot.slane %v2052, 1
  %v2054 = vadd.f32 %v2052, %v2053
  %v2055 = vsub.f32 %v1927, %v1964
  %v2056 = vsub.f32 %v1928, %v1970
  %v2057 = vsub.f32 %v1929, %v1976
  %v2058 = vsub.f32 %v1930, %v1982
  %v2059 = vsub.f32 %v1931, %v1988
  %v2060 = vsub.f32 %v1932, %v1994
  %v2061 = vsub.f32 %v1933, %v2000
  %v2062 = vsub.f32 %v1934, %v2006
  %v2063 = vsub.f32 %v1935, %v2012
  %v2064 = vsub.f32 %v1936, %v2018
  %v2065 = vsub.f32 %v1937, %v2024
  %v2066 = vsub.f32 %v1938, %v2030
  %v2067 = vsub.f32 %v1939, %v2036
  %v2068 = vsub.f32 %v1940, %v2042
  %v2069 = vsub.f32 %v1941, %v2048
  %v2070 = vsub.f32 %v1942, %v2054
  %v2073 = vlaneseq
  %v2074 = vshrl.u32 %v2073, 7
  %v2075 = vsub.s32 0, %v2074
  %v2076 = vrot.slane %v1539, %v2075
  %v2077 = vlaneseq
  %v2078 = vshrl.u32 %v2077, 7
  %v2079 = vsub.s32 1, %v2078
  %v2080 = vrot.slane %v1539, %v2079
  %v2081 = vlaneseq
  %v2082 = vshrl.u32 %v2081, 7
  %v2083 = vsub.s32 2, %v2082
  %v2084 = vrot.slane %v1539, %v2083
  %v2085 = vlaneseq
  %v2086 = vshrl.u32 %v2085, 7
  %v2087 = vsub.s32 3, %v2086
  %v2088 = vrot.slane %v1539, %v2087
  %v2089 = vlaneseq
  %v2090 = vshrl.u32 %v2089, 7
  %v2091 = vsub.s32 4, %v2090
  %v2092 = vrot.slane %v1539, %v2091
  %v2093 = vlaneseq
  %v2094 = vshrl.u32 %v2093, 7
  %v2095 = vsub.s32 5, %v2094
  %v2096 = vrot.slane %v1539, %v2095
  %v2097 = vlaneseq
  %v2098 = vshrl.u32 %v2097, 7
  %v2099 = vsub.s32 6, %v2098
  %v2100 = vrot.slane %v1539, %v2099
  %v2101 = vlaneseq
  %v2102 = vshrl.u32 %v2101, 7
  %v2103 = vsub.s32 7, %v2102
  %v2104 = vrot.slane %v1539, %v2103
  %v2105 = vlaneseq
  %v2106 = vshrl.u32 %v2105, 7
  %v2107 = vsub.s32 0, %v2106
  %v2108 = vrot.slane %v1540, %v2107
  %v2109 = vlaneseq
  %v2110 = vshrl.u32 %v2109, 7
  %v2111 = vsub.s32 1, %v2110
  %v2112 = vrot.slane %v1540, %v2111
  %v2113 = vlaneseq
  %v2114 = vshrl.u32 %v2113, 7
  %v2115 = vsub.s32 2, %v2114
  %v2116 = vrot.slane %v1540, %v2115
  %v2117 = vlaneseq
  %v2118 = vshrl.u32 %v2117, 7
  %v2119 = vsub.s32 3, %v2118
  %v2120 = vrot.slane %v1540, %v2119
  %v2121 = vlaneseq
  %v2122 = vshrl.u32 %v2121, 7
  %v2123 = vsub.s32 4, %v2122
  %v2124 = vrot.slane %v1540, %v2123
  %v2125 = vlaneseq
  %v2126 = vshrl.u32 %v2125, 7
  %v2127 = vsub.s32 5, %v2126
  %v2128 = vrot.slane %v1540, %v2127
  %v2129 = vlaneseq
  %v2130 = vshrl.u32 %v2129, 7
  %v2131 = vsub.s32 6, %v2130
  %v2132 = vrot.slane %v1540, %v2131
  %v2133 = vlaneseq
  %v2134 = vshrl.u32 %v2133, 7
  %v2135 = vsub.s32 7, %v2134
  %v2136 = vrot.slane %v1540, %v2135
  %v2153 = vmul.f32 %v2055, %v2076
  %v2154 = vmul.f32 %v2056, %v2080
  %v2155 = vmul.f32 %v2057, %v2084
  %v2156 = vmul.f32 %v2058, %v2088
  %v2157 = vmul.f32 %v2059, %v2092
  %v2158 = vmul.f32 %v2060, %v2096
  %v2159 = vmul.f32 %v2061, %v2100
  %v2160 = vmul.f32 %v2062, %v2104
  %v2161 = vmul.f32 %v2063, %v2108
  %v2162 = vmul.f32 %v2064, %v2112
  %v2163 = vmul.f32 %v2065, %v2116
  %v2164 = vmul.f32 %v2066, %v2120
  %v2165 = vmul.f32 %v2067, %v2124
  %v2166 = vmul.f32 %v2068, %v2128
  %v2167 = vmul.f32 %v2069, %v2132
  %v2168 = vmul.f32 %v2070, %v2136
  %v2185 = vcombine.low %v2153, %v2154
  %v2186 = vcombine.low %v2155, %v2156
  %v2187 = vcombine.low %v2157, %v2158
  %v2188 = vcombine.low %v2159, %v2160
  %v2190 = vunpack.c.l.s4 1966171168
  %v2191 = vunpack.c.0.s8 %v2190
  %v2192 = vlaneseq
  %v2193 = vshrl.u32 %v2192, 7
  %v2194 = vsub.s32 %v2191, %v2193
  %v2195 = vrot.slane %v2185, %v2194
  %v2197 = vunpack.c.l.s4 1966171168
  %v2198 = vunpack.c.0.s8 %v2197
  %v2199 = vlaneseq
  %v2200 = vshrl.u32 %v2199, 7
  %v2201 = vsub.s32 %v2198, %v2200
  %v2202 = vrot.slane %v2186, %v2201
  %v2204 = vunpack.c.l.s4 1966171168
  %v2205 = vunpack.c.0.s8 %v2204
  %v2206 = vlaneseq
  %v2207 = vshrl.u32 %v2206, 7
  %v2208 = vsub.s32 %v2205, %v2207
  %v2209 = vrot.slane %v2187, %v2208
  %v2211 = vunpack.c.l.s4 1966171168
  %v2212 = vunpack.c.0.s8 %v2211
  %v2213 = vlaneseq
  %v2214 = vshrl.u32 %v2213, 7
  %v2215 = vsub.s32 %v2212, %v2214
  %v2216 = vrot.slane %v2188, %v2215
  %v2217 = vcombine.low %v2195, %v2202
  %v2218 = vcombine.low %v2209, %v2216
  %v2220 = vunpack.c.l.s4 1966171168
  %v2221 = vunpack.c.0.s8 %v2220
  %v2222 = vlaneseq
  %v2223 = vshrl.u32 %v2222, 7
  %v2224 = vsub.s32 %v2221, %v2223
  %v2225 = vrot.slane %v2217, %v2224
  %v2227 = vunpack.c.l.s4 1966171168
  %v2228 = vunpack.c.0.s8 %v2227
  %v2229 = vlaneseq
  %v2230 = vshrl.u32 %v2229, 7
  %v2231 = vsub.s32 %v2228, %v2230
  %v2232 = vrot.slane %v2218, %v2231
  %v2233 = vcombine.low %v2225, %v2232
  %v2234 = vcombine.low %v2161, %v2162
  %v2235 = vcombine.low %v2163, %v2164
  %v2236 = vcombine.low %v2165, %v2166
  %v2237 = vcombine.low %v2167, %v2168
  %v2239 = vunpack.c.l.s4 1966171168
  %v2240 = vunpack.c.0.s8 %v2239
  %v2241 = vlaneseq
  %v2242 = vshrl.u32 %v2241, 7
  %v2243 = vsub.s32 %v2240, %v2242
  %v2244 = vrot.slane %v2234, %v2243
  %v2246 = vunpack.c.l.s4 1966171168
  %v2247 = vunpack.c.0.s8 %v2246
  %v2248 = vlaneseq
  %v2249 = vshrl.u32 %v2248, 7
  %v2250 = vsub.s32 %v2247, %v2249
  %v2251 = vrot.slane %v2235, %v2250
  %v2253 = vunpack.c.l.s4 1966171168
  %v2254 = vunpack.c.0.s8 %v2253
  %v2255 = vlaneseq
  %v2256 = vshrl.u32 %v2255, 7
  %v2257 = vsub.s32 %v2254, %v2256
  %v2258 = vrot.slane %v2236, %v2257
  %v2260 = vunpack.c.l.s4 1966171168
  %v2261 = vunpack.c.0.s8 %v2260
  %v2262 = vlaneseq
  %v2263 = vshrl.u32 %v2262, 7
  %v2264 = vsub.s32 %v2261, %v2263
  %v2265 = vrot.slane %v2237, %v2264
  %v2266 = vcombine.low %v2244, %v2251
  %v2267 = vcombine.low %v2258, %v2265
  %v2269 = vunpack.c.l.s4 1966171168
  %v2270 = vunpack.c.0.s8 %v2269
  %v2271 = vlaneseq
  %v2272 = vshrl.u32 %v2271, 7
  %v2273 = vsub.s32 %v2270, %v2272
  %v2274 = vrot.slane %v2266, %v2273
  %v2276 = vunpack.c.l.s4 1966171168
  %v2277 = vunpack.c.0.s8 %v2276
  %v2278 = vlaneseq
  %v2279 = vshrl.u32 %v2278, 7
  %v2280 = vsub.s32 %v2277, %v2279
  %v2281 = vrot.slane %v2267, %v2280
  %v2282 = vcombine.low %v2274, %v2281
  %2285 = vst [vmem:[%s4] sm:$0xff] %v2233
  %2286 = vst [vmem:[%s4 + $0x8] sm:$0xff] %v2282
  %v2287 = vmul.f32 %v1501, %v1639
  %v2288 = vmul.f32 %v1502, %v1640
  %v2289 = vmul.f32 %v1503, %v1641
  %v2290 = vmul.f32 %v1504, %v1642
  %v2291 = vmul.f32 %v1505, %v1643
  %v2292 = vmul.f32 %v1506, %v1644
  %v2293 = vmul.f32 %v1507, %v1645
  %v2294 = vmul.f32 %v1508, %v1646
  %v2295 = vmul.f32 %v1509, %v1647
  %v2296 = vmul.f32 %v1510, %v1648
  %v2297 = vmul.f32 %v1511, %v1649
  %v2298 = vmul.f32 %v1512, %v1650
  %v2299 = vmul.f32 %v1513, %v1651
  %v2300 = vmul.f32 %v1514, %v1652
  %v2301 = vmul.f32 %v1515, %v1653
  %v2302 = vmul.f32 %v1516, %v1654
  %v2303 = vrot.slane %v2287, 4
  %v2304 = vadd.f32 %v2287, %v2303
  %v2305 = vrot.slane %v2304, 2
  %v2306 = vadd.f32 %v2304, %v2305
  %v2307 = vrot.slane %v2306, 1
  %v2308 = vadd.f32 %v2306, %v2307
  %v2309 = vrot.slane %v2288, 4
  %v2310 = vadd.f32 %v2288, %v2309
  %v2311 = vrot.slane %v2310, 2
  %v2312 = vadd.f32 %v2310, %v2311
  %v2313 = vrot.slane %v2312, 1
  %v2314 = vadd.f32 %v2312, %v2313
  %v2315 = vrot.slane %v2289, 4
  %v2316 = vadd.f32 %v2289, %v2315
  %v2317 = vrot.slane %v2316, 2
  %v2318 = vadd.f32 %v2316, %v2317
  %v2319 = vrot.slane %v2318, 1
  %v2320 = vadd.f32 %v2318, %v2319
  %v2321 = vrot.slane %v2290, 4
  %v2322 = vadd.f32 %v2290, %v2321
  %v2323 = vrot.slane %v2322, 2
  %v2324 = vadd.f32 %v2322, %v2323
  %v2325 = vrot.slane %v2324, 1
  %v2326 = vadd.f32 %v2324, %v2325
  %v2327 = vrot.slane %v2291, 4
  %v2328 = vadd.f32 %v2291, %v2327
  %v2329 = vrot.slane %v2328, 2
  %v2330 = vadd.f32 %v2328, %v2329
  %v2331 = vrot.slane %v2330, 1
  %v2332 = vadd.f32 %v2330, %v2331
  %v2333 = vrot.slane %v2292, 4
  %v2334 = vadd.f32 %v2292, %v2333
  %v2335 = vrot.slane %v2334, 2
  %v2336 = vadd.f32 %v2334, %v2335
  %v2337 = vrot.slane %v2336, 1
  %v2338 = vadd.f32 %v2336, %v2337
  %v2339 = vrot.slane %v2293, 4
  %v2340 = vadd.f32 %v2293, %v2339
  %v2341 = vrot.slane %v2340, 2
  %v2342 = vadd.f32 %v2340, %v2341
  %v2343 = vrot.slane %v2342, 1
  %v2344 = vadd.f32 %v2342, %v2343
  %v2345 = vrot.slane %v2294, 4
  %v2346 = vadd.f32 %v2294, %v2345
  %v2347 = vrot.slane %v2346, 2
  %v2348 = vadd.f32 %v2346, %v2347
  %v2349 = vrot.slane %v2348, 1
  %v2350 = vadd.f32 %v2348, %v2349
  %v2351 = vrot.slane %v2295, 4
  %v2352 = vadd.f32 %v2295, %v2351
  %v2353 = vrot.slane %v2352, 2
  %v2354 = vadd.f32 %v2352, %v2353
  %v2355 = vrot.slane %v2354, 1
  %v2356 = vadd.f32 %v2354, %v2355
  %v2357 = vrot.slane %v2296, 4
  %v2358 = vadd.f32 %v2296, %v2357
  %v2359 = vrot.slane %v2358, 2
  %v2360 = vadd.f32 %v2358, %v2359
  %v2361 = vrot.slane %v2360, 1
  %v2362 = vadd.f32 %v2360, %v2361
  %v2363 = vrot.slane %v2297, 4
  %v2364 = vadd.f32 %v2297, %v2363
  %v2365 = vrot.slane %v2364, 2
  %v2366 = vadd.f32 %v2364, %v2365
  %v2367 = vrot.slane %v2366, 1
  %v2368 = vadd.f32 %v2366, %v2367
  %v2369 = vrot.slane %v2298, 4
  %v2370 = vadd.f32 %v2298, %v2369
  %v2371 = vrot.slane %v2370, 2
  %v2372 = vadd.f32 %v2370, %v2371
  %v2373 = vrot.slane %v2372, 1
  %v2374 = vadd.f32 %v2372, %v2373
  %v2375 = vrot.slane %v2299, 4
  %v2376 = vadd.f32 %v2299, %v2375
  %v2377 = vrot.slane %v2376, 2
  %v2378 = vadd.f32 %v2376, %v2377
  %v2379 = vrot.slane %v2378, 1
  %v2380 = vadd.f32 %v2378, %v2379
  %v2381 = vrot.slane %v2300, 4
  %v2382 = vadd.f32 %v2300, %v2381
  %v2383 = vrot.slane %v2382, 2
  %v2384 = vadd.f32 %v2382, %v2383
  %v2385 = vrot.slane %v2384, 1
  %v2386 = vadd.f32 %v2384, %v2385
  %v2387 = vrot.slane %v2301, 4
  %v2388 = vadd.f32 %v2301, %v2387
  %v2389 = vrot.slane %v2388, 2
  %v2390 = vadd.f32 %v2388, %v2389
  %v2391 = vrot.slane %v2390, 1
  %v2392 = vadd.f32 %v2390, %v2391
  %v2393 = vrot.slane %v2302, 4
  %v2394 = vadd.f32 %v2302, %v2393
  %v2395 = vrot.slane %v2394, 2
  %v2396 = vadd.f32 %v2394, %v2395
  %v2397 = vrot.slane %v2396, 1
  %v2398 = vadd.f32 %v2396, %v2397
  %v2399 = vmul.f32 %v2308, %v2076
  %v2400 = vmul.f32 %v2314, %v2080
  %v2401 = vmul.f32 %v2320, %v2084
  %v2402 = vmul.f32 %v2326, %v2088
  %v2403 = vmul.f32 %v2332, %v2092
  %v2404 = vmul.f32 %v2338, %v2096
  %v2405 = vmul.f32 %v2344, %v2100
  %v2406 = vmul.f32 %v2350, %v2104
  %v2407 = vmul.f32 %v2356, %v2108
  %v2408 = vmul.f32 %v2362, %v2112
  %v2409 = vmul.f32 %v2368, %v2116
  %v2410 = vmul.f32 %v2374, %v2120
  %v2411 = vmul.f32 %v2380, %v2124
  %v2412 = vmul.f32 %v2386, %v2128
  %v2413 = vmul.f32 %v2392, %v2132
  %v2414 = vmul.f32 %v2398, %v2136
  %v2431 = vcombine.low %v2399, %v2400
  %v2432 = vcombine.low %v2401, %v2402
  %v2433 = vcombine.low %v2403, %v2404
  %v2434 = vcombine.low %v2405, %v2406
  %v2436 = vunpack.c.l.s4 1966171168
  %v2437 = vunpack.c.0.s8 %v2436
  %v2438 = vlaneseq
  %v2439 = vshrl.u32 %v2438, 7
  %v2440 = vsub.s32 %v2437, %v2439
  %v2441 = vrot.slane %v2431, %v2440
  %v2443 = vunpack.c.l.s4 1966171168
  %v2444 = vunpack.c.0.s8 %v2443
  %v2445 = vlaneseq
  %v2446 = vshrl.u32 %v2445, 7
  %v2447 = vsub.s32 %v2444, %v2446
  %v2448 = vrot.slane %v2432, %v2447
  %v2450 = vunpack.c.l.s4 1966171168
  %v2451 = vunpack.c.0.s8 %v2450
  %v2452 = vlaneseq
  %v2453 = vshrl.u32 %v2452, 7
  %v2454 = vsub.s32 %v2451, %v2453
  %v2455 = vrot.slane %v2433, %v2454
  %v2457 = vunpack.c.l.s4 1966171168
  %v2458 = vunpack.c.0.s8 %v2457
  %v2459 = vlaneseq
  %v2460 = vshrl.u32 %v2459, 7
  %v2461 = vsub.s32 %v2458, %v2460
  %v2462 = vrot.slane %v2434, %v2461
  %v2463 = vcombine.low %v2441, %v2448
  %v2464 = vcombine.low %v2455, %v2462
  %v2466 = vunpack.c.l.s4 1966171168
  %v2467 = vunpack.c.0.s8 %v2466
  %v2468 = vlaneseq
  %v2469 = vshrl.u32 %v2468, 7
  %v2470 = vsub.s32 %v2467, %v2469
  %v2471 = vrot.slane %v2463, %v2470
  %v2473 = vunpack.c.l.s4 1966171168
  %v2474 = vunpack.c.0.s8 %v2473
  %v2475 = vlaneseq
  %v2476 = vshrl.u32 %v2475, 7
  %v2477 = vsub.s32 %v2474, %v2476
  %v2478 = vrot.slane %v2464, %v2477
  %v2479 = vcombine.low %v2471, %v2478
  %v2480 = vcombine.low %v2407, %v2408
  %v2481 = vcombine.low %v2409, %v2410
  %v2482 = vcombine.low %v2411, %v2412
  %v2483 = vcombine.low %v2413, %v2414
  %v2485 = vunpack.c.l.s4 1966171168
  %v2486 = vunpack.c.0.s8 %v2485
  %v2487 = vlaneseq
  %v2488 = vshrl.u32 %v2487, 7
  %v2489 = vsub.s32 %v2486, %v2488
  %v2490 = vrot.slane %v2480, %v2489
  %v2492 = vunpack.c.l.s4 1966171168
  %v2493 = vunpack.c.0.s8 %v2492
  %v2494 = vlaneseq
  %v2495 = vshrl.u32 %v2494, 7
  %v2496 = vsub.s32 %v2493, %v2495
  %v2497 = vrot.slane %v2481, %v2496
  %v2499 = vunpack.c.l.s4 1966171168
  %v2500 = vunpack.c.0.s8 %v2499
  %v2501 = vlaneseq
  %v2502 = vshrl.u32 %v2501, 7
  %v2503 = vsub.s32 %v2500, %v2502
  %v2504 = vrot.slane %v2482, %v2503
  %v2506 = vunpack.c.l.s4 1966171168
  %v2507 = vunpack.c.0.s8 %v2506
  %v2508 = vlaneseq
  %v2509 = vshrl.u32 %v2508, 7
  %v2510 = vsub.s32 %v2507, %v2509
  %v2511 = vrot.slane %v2483, %v2510
  %v2512 = vcombine.low %v2490, %v2497
  %v2513 = vcombine.low %v2504, %v2511
  %v2515 = vunpack.c.l.s4 1966171168
  %v2516 = vunpack.c.0.s8 %v2515
  %v2517 = vlaneseq
  %v2518 = vshrl.u32 %v2517, 7
  %v2519 = vsub.s32 %v2516, %v2518
  %v2520 = vrot.slane %v2512, %v2519
  %v2522 = vunpack.c.l.s4 1966171168
  %v2523 = vunpack.c.0.s8 %v2522
  %v2524 = vlaneseq
  %v2525 = vshrl.u32 %v2524, 7
  %v2526 = vsub.s32 %v2523, %v2525
  %v2527 = vrot.slane %v2513, %v2526
  %v2528 = vcombine.low %v2520, %v2527
  %2531 = vst [vmem:[%s5] sm:$0xff] %v2479
  %2532 = vst [vmem:[%s5 + $0x8] sm:$0xff] %v2528
  %2533 = vst [vmem:[%s6] sm:$0xff] %v1539
  %2534 = vst [vmem:[%s6 + $0x8] sm:$0xff] %v1540
  // Predicated region
  $region18: #{pixel_contrastive_loss.1} parent=0 // pred_check
    _
  $region19: #{pixel_contrastive_loss.1} parent=0 // pred_check_branch
    %2536 = sbr.rel (0) target = $region21
  $region20: #{pixel_contrastive_loss.1} parent=0 // pred_region
    _
  $region21: #{pixel_contrastive_loss.1} parent=0 // pred_fallthru
    _
  // Predicated region
  $region22: #{pixel_contrastive_loss.1} parent=0 // pred_check
    _
  $region23: #{pixel_contrastive_loss.1} parent=0 // pred_check_branch
    %2538 = sbr.rel (0) target = $region25
  $region24: #{pixel_contrastive_loss.1} parent=0 // pred_region
    _
  $region25: #{pixel_contrastive_loss.1} parent=0 // pred_fallthru
    _
  // Predicated region
  $region26: #{pixel_contrastive_loss.1} parent=0 // pred_check
    _
  $region27: #{pixel_contrastive_loss.1} parent=0 // pred_check_branch
    %2540 = sbr.rel (0) target = $region29
  $region28: #{pixel_contrastive_loss.1} parent=0 // pred_region
    _
  $region29: #{pixel_contrastive_loss.1} parent=0 // pred_fallthru
    _
  // Predicated region
  $region30: #{pixel_contrastive_loss.1} parent=0 // pred_check
    _
  $region31: #{pixel_contrastive_loss.1} parent=0 // pred_check_branch
    %2542 = sbr.rel (0) target = $region33
  $region32: #{pixel_contrastive_loss.1} parent=0 // pred_region
    _
  $region33: #{pixel_contrastive_loss.1} parent=0 // pred_fallthru
    _
  // Predicated region
  $region34: #{pixel_contrastive_loss.1} parent=0 // pred_check
    _
  $region35: #{pixel_contrastive_loss.1} parent=0 // pred_check_branch
    %2544 = sbr.rel (0) target = $region37
  $region36: #{pixel_contrastive_loss.1} parent=0 // pred_region
    _
  $region37: #{pixel_contrastive_loss.1} parent=0 // pred_fallthru
    _
  // Predicated region
  $region38: #{pixel_contrastive_loss.1} parent=0 // pred_check
    _
  $region39: #{pixel_contrastive_loss.1} parent=0 // pred_check_branch
    %2546 = sbr.rel (0) target = $region41
  $region40: #{pixel_contrastive_loss.1} parent=0 // pred_region
    _
  $region41: #{pixel_contrastive_loss.1} parent=0 // pred_fallthru
    _

</llo_original>
